<compile_context>
chip_gen: v5e
topology: v5e:2x2
jax: 0.10.0
libtpu: 0.0.40
codegen_flags: <defaults>
</compile_context>

<pallas_src>
import math

import jax
import jax.numpy as jnp
from jax.experimental import pallas as pl
from jax.experimental.pallas import tpu as pltpu


LATENT_DIM = 16
TIME_EMB_DIM = 128
HIDDEN_DIM = 128
_T_LANE = LATENT_DIM            # lane of the activation slab that carries t
_HAS_SHORTCUT = (True, False, False, True)

# const-slab row layout
#  0:t1_b 1:t2_b
#  2:b1.fc1 3:b1.fc2 4:b1.tm 5:b1.sc
#  6:b2.fc1 7:b2.fc2 8:b2.tm
#  9:b3.fc1 10:b3.fc2 11:b3.tm
# 12:b4.fc1 13:b4.fc2 14:b4.tm 15:b4.sc
# 16:freqs 17:phase


# ----------------------------------------------------------------------------
# Fused whole-network kernel
# ----------------------------------------------------------------------------
def _unet_kernel(xt_ref, w_ref, wide_ref, c_ref, o_ref):
    f32, bf16 = jnp.float32, jnp.bfloat16

    def mm(a_bf16, w):
        # bf16 x bf16 operands, f32 accumulate on the MXU (default precision).
        return jnp.dot(a_bf16, w, preferred_element_type=f32)

    def bias(i):
        return c_ref[i:i + 1, :]                     # (1, 128) f32, broadcasts over B

    # ---- sinusoidal time embedding: sin(t*freq + phase), cos(x)=sin(x+pi/2) ----
    t = xt_ref[:, _T_LANE:_T_LANE + 1]               # (B, 1) f32
    t_emb = jnp.sin(t * c_ref[16:17, :] + c_ref[17:18, :])   # (B, 128)

    # ---- time MLP: Linear -> ReLU -> Linear -----------------------------------
    te = jnp.maximum(mm(t_emb.astype(bf16), w_ref[0]) + bias(0), 0.0)
    te_bf = (mm(te.astype(bf16), w_ref[1]) + bias(1)).astype(bf16)

    # ---- all four per-block time projections in ONE wide matmul ---------------
    teproj = mm(te_bf, wide_ref[:, 512:1024])        # (B, 512)

    # ---- block 1 (16 -> 128, Linear shortcut): fc1 & shortcut share LHS -------
    x_bf = xt_ref[...].astype(bf16)                  # lanes >=16 masked by zero weight rows
    f1 = mm(x_bf, wide_ref[:, 0:256])                # [fc1 | shortcut]  (B, 256)
    h = jnp.maximum(f1[:, 0:128] + bias(2), 0.0)
    h = h + teproj[:, 0:128] + bias(4)
    h = jnp.maximum(mm(h.astype(bf16), w_ref[2]) + bias(3), 0.0)
    h = h + f1[:, 128:256] + bias(5)

    # ---- blocks 2 & 3 (128 -> 128, identity shortcut) --------------------------
    for wi, bi, ti in ((3, 6, 1), (5, 9, 2)):
        h_in = h
        h = jnp.maximum(mm(h_in.astype(bf16), w_ref[wi]) + bias(bi), 0.0)
        h = h + teproj[:, ti * 128:(ti + 1) * 128] + bias(bi + 2)
        h = jnp.maximum(mm(h.astype(bf16), w_ref[wi + 1]) + bias(bi + 1), 0.0)
        h = h + h_in

    # ---- block 4 (128 -> 16, Linear shortcut): fc1 & shortcut share LHS --------
    f4 = mm(h.astype(bf16), wide_ref[:, 256:512])    # [fc1_pad | sc_pad]  (B, 256)
    h = jnp.maximum(f4[:, 0:128] + bias(12), 0.0)
    h = h + teproj[:, 384:512] + bias(14)
    h = jnp.maximum(mm(h.astype(bf16), w_ref[7]) + bias(13), 0.0)
    h = h + f4[:, 128:256] + bias(15)

    o_ref[...] = h[:, :LATENT_DIM].astype(o_ref.dtype)


# ----------------------------------------------------------------------------
# Host-side parameter packing (done once, outside jit)
# ----------------------------------------------------------------------------
def prepare_params(params):
    """Pack all weights/biases into 3 contiguous slabs."""
    def T(w):                                             # (out,in) -> (in,out)
        return jnp.asarray(w, jnp.float32).T

    def pad_rows(w):                                      # pad fan-in to 128
        return jnp.pad(w, ((0, HIDDEN_DIM - w.shape[0]), (0, 0)))

    def pad_cols(w):                                      # pad fan-out to 128
        return jnp.pad(w, ((0, 0), (0, HIDDEN_DIM - w.shape[1])))

    def pb(b):                                            # pad bias to 128 lanes
        b = jnp.asarray(b, jnp.float32)
        return jnp.pad(b, (0, HIDDEN_DIM - b.shape[0]))

    tp = params["time_mlp"]
    b1, b2, b3, b4 = params["blocks"]

    # slab of square 128x128 weights, indexed by leading axis
    w_slab = jnp.stack([
        T(tp["t1_w"]), T(tp["t2_w"]),
        T(b1["fc2_w"]),
        T(b2["fc1_w"]), T(b2["fc2_w"]),
        T(b3["fc1_w"]), T(b3["fc2_w"]),
        pad_rows(pad_cols(T(b4["fc2_w"]))),
    ]).astype(jnp.bfloat16)

    # lane-concatenated fused weights (128, 1024)
    wide_slab = jnp.concatenate([
        pad_rows(T(b1["fc1_w"])), pad_rows(T(b1["sc_w"])),     # cols   0:256
        pad_cols(T(b4["fc1_w"])), pad_cols(T(b4["sc_w"])),     # cols 256:512
        T(b1["tm_w"]), T(b2["tm_w"]), T(b3["tm_w"]),           # cols 512:896
        pad_cols(T(b4["tm_w"])),                               # cols 896:1024
    ], axis=1).astype(jnp.bfloat16)

    # biases + precomputed embedding constants (18, 128) f32
    half = TIME_EMB_DIM // 2
    factor = math.log(10000.0) / (half - 1)
    lane = jnp.arange(TIME_EMB_DIM)
    freqs = jnp.exp((lane % half).astype(jnp.float32) * (-factor))
    phase = jnp.where(lane < half, 0.0, math.pi / 2.0).astype(jnp.float32)

    const_slab = jnp.stack([
        pb(tp["t1_b"]), pb(tp["t2_b"]),
        pb(b1["fc1_b"]), pb(b1["fc2_b"]), pb(b1["tm_b"]), pb(b1["sc_b"]),
        pb(b2["fc1_b"]), pb(b2["fc2_b"]), pb(b2["tm_b"]),
        pb(b3["fc1_b"]), pb(b3["fc2_b"]), pb(b3["tm_b"]),
        pb(b4["fc1_b"]), pb(b4["fc2_b"]), pb(b4["tm_b"]), pb(b4["sc_b"]),
        freqs, phase,
    ]).astype(jnp.float32)

    return w_slab, wide_slab, const_slab


# ----------------------------------------------------------------------------
# Forward pass: one fused pallas_call
# ----------------------------------------------------------------------------
def latent_unet_forward(x, t, slabs):
    w_slab, wide_slab, const_slab = slabs
    B = x.shape[0]

    # Pack x (lanes 0:16) and t (lane 16) into one f32 activation slab -> 1 DMA.
    xt = jnp.zeros((B, HIDDEN_DIM), jnp.float32)
    xt = xt.at[:, :LATENT_DIM].set(x.astype(jnp.float32))
    xt = xt.at[:, _T_LANE].set(t.astype(jnp.float32))

    vmem = pl.BlockSpec(memory_space=pltpu.MemorySpace.VMEM)
    bytes_accessed = (w_slab.size * 2 + wide_slab.size * 2 + const_slab.size * 4
                      + xt.size * 4 + B * LATENT_DIM * 4)
    return pl.pallas_call(
        _unet_kernel,
        out_shape=jax.ShapeDtypeStruct((B, LATENT_DIM), jnp.float32),
        in_specs=[vmem] * 4,
        out_specs=vmem,
        cost_estimate=pl.CostEstimate(
            flops=2 * B * 16 * 128 * 128,          # 16 equivalent 128x128 GEMM tiles/row
            transcendentals=B * TIME_EMB_DIM,      # one sin pass
            bytes_accessed=int(bytes_accessed)),
    )(xt, w_slab, wide_slab, const_slab)


# ----------------------------------------------------------------------------
# Deterministic parameter init (PyTorch nn.Linear default: U(+-1/sqrt(fan_in)))
# ----------------------------------------------------------------------------
def init_params(key, latent_dim=LATENT_DIM, time_emb_dim=TIME_EMB_DIM,
                hidden_dim=HIDDEN_DIM):
    keys = iter(jax.random.split(key, 64))

    def linear(out_f, in_f):
        bound = 1.0 / math.sqrt(in_f)
        w = jax.random.uniform(next(keys), (out_f, in_f), jnp.float32, -bound, bound)
        b = jax.random.uniform(next(keys), (out_f,), jnp.float32, -bound, bound)
        return w, b

    t1_w, t1_b = linear(hidden_dim, time_emb_dim)
    t2_w, t2_b = linear(hidden_dim, hidden_dim)
    dims = [(latent_dim, hidden_dim), (hidden_dim, hidden_dim),
            (hidden_dim, hidden_dim), (hidden_dim, latent_dim)]
    blocks = []
    for (cin, cout), sc in zip(dims, _HAS_SHORTCUT):
        fc1_w, fc1_b = linear(cout, cin)
        fc2_w, fc2_b = linear(cout, cout)
        tm_w, tm_b = linear(cout, hidden_dim)
        blk = {"fc1_w": fc1_w, "fc1_b": fc1_b,
               "fc2_w": fc2_w, "fc2_b": fc2_b,
               "tm_w": tm_w, "tm_b": tm_b}
        if sc:
            sc_w, sc_b = linear(cout, cin)
            blk["sc_w"], blk["sc_b"] = sc_w, sc_b
        blocks.append(blk)
    return {"time_mlp": {"t1_w": t1_w, "t1_b": t1_b, "t2_w": t2_w, "t2_b": t2_b},
            "blocks": blocks}


# ----------------------------------------------------------------------------
# Pure-JAX f32 reference (matches the PyTorch module semantics)
# ----------------------------------------------------------------------------
def _ref_forward(x, t, params):
    half = TIME_EMB_DIM // 2
    factor = math.log(10000.0) / (half - 1)
    freqs = jnp.exp(jnp.arange(half, dtype=jnp.float32) * (-factor))
    ang = t[:, None] * freqs[None, :]
    t_emb = jnp.concatenate([jnp.sin(ang), jnp.cos(ang)], axis=-1)

    tp = params["time_mlp"]
    te = jax.nn.relu(t_emb @ tp["t1_w"].T + tp["t1_b"])
    te = te @ tp["t2_w"].T + tp["t2_b"]

    h = x
    for blk, sc in zip(params["blocks"], _HAS_SHORTCUT):
        h_in = h
        h = jax.nn.relu(h_in @ blk["fc1_w"].T + blk["fc1_b"])
        h = h + te @ blk["tm_w"].T + blk["tm_b"]
        h = jax.nn.relu(h @ blk["fc2_w"].T + blk["fc2_b"])
        if sc:
            h = h + h_in @ blk["sc_w"].T + blk["sc_b"]
        else:
            h = h + h_in
    return h


if __name__ == "__main__":
    key = jax.random.PRNGKey(0)
    k_x, k_t, k_p = jax.random.split(key, 3)

    B = 2
    x = jax.random.normal(k_x, (B, LATENT_DIM), dtype=jnp.float32)
    t = jax.random.uniform(k_t, (B,), jnp.float32, 0.0, 100.0)   # diffusion timesteps
    params = init_params(k_p)
    slabs = prepare_params(params)      # host-side: transpose / pad / pack, once

    fwd = jax.jit(latent_unet_forward)
    out = fwd(x, t, slabs)
    jax.block_until_ready(out)

    ref = _ref_forward(x, t, params)
    assert out.shape == (B, LATENT_DIM)
    # bf16 matmul operands with f32 accumulation -> relaxed tolerance vs pure-f32 ref.
    assert jnp.allclose(out, ref, rtol=5e-2, atol=5e-2), (
        f"max abs err = {float(jnp.max(jnp.abs(out - ref)))}")

    print("KERNEL_OK")
</pallas_src>

<mosaic_0001>
module attributes {stable_mosaic.version = 11 : i64} {
  func.func @_unet_kernel(%arg0: memref<2x128xf32, #tpu.memory_space<vmem>>, %arg1: memref<8x128x128xbf16, #tpu.memory_space<vmem>>, %arg2: memref<128x1024xbf16, #tpu.memory_space<vmem>>, %arg3: memref<18x128xf32, #tpu.memory_space<vmem>>, %arg4: memref<2x16xf32, #tpu.memory_space<vmem>>) attributes {dimension_semantics = [], scalar_prefetch = 0 : i64, scratch_operands = 0 : i64, tpu.core_type = #tpu.core_type<tc>} {
    %c0 = arith.constant 0 : index
    %c16 = arith.constant 16 : index
    %0 = vector.load %arg0[%c0, %c16] : memref<2x128xf32, #tpu.memory_space<vmem>>, vector<2x1xf32>
    %c16_0 = arith.constant 16 : index
    %c0_1 = arith.constant 0 : index
    %1 = vector.load %arg3[%c16_0, %c0_1] : memref<18x128xf32, #tpu.memory_space<vmem>>, vector<1x128xf32>
    %2 = vector.broadcast %0 : vector<2x1xf32> to vector<2x128xf32>
    %3 = vector.broadcast %1 : vector<1x128xf32> to vector<2x128xf32>
    %4 = arith.mulf %2, %3 : vector<2x128xf32>
    %c17 = arith.constant 17 : index
    %c0_2 = arith.constant 0 : index
    %5 = vector.load %arg3[%c17, %c0_2] : memref<18x128xf32, #tpu.memory_space<vmem>>, vector<1x128xf32>
    %6 = vector.broadcast %5 : vector<1x128xf32> to vector<2x128xf32>
    %7 = arith.addf %4, %6 : vector<2x128xf32>
    %8 = math.sin %7 : vector<2x128xf32>
    %9 = arith.truncf %8 : vector<2x128xf32> to vector<2x128xbf16>
    %c0_3 = arith.constant 0 : index
    %c0_4 = arith.constant 0 : index
    %c0_5 = arith.constant 0 : index
    %10 = vector.load %arg1[%c0_3, %c0_4, %c0_5] : memref<8x128x128xbf16, #tpu.memory_space<vmem>>, vector<1x128x128xbf16>
    %11 = vector.shape_cast %10 : vector<1x128x128xbf16> to vector<128x128xbf16>
    %cst = arith.constant dense<0.000000e+00> : vector<2x128xf32>
    %12 = tpu.matmul %9, %11, %cst {dimension_numbers = #tpu.dot_dimension_numbers<[1], [0], [0], [1], [0, 0, 1, 1], [], []>} : vector<2x128xbf16>, vector<128x128xbf16>, vector<2x128xf32> -> vector<2x128xf32>
    %c0_6 = arith.constant 0 : index
    %c0_7 = arith.constant 0 : index
    %13 = vector.load %arg3[%c0_6, %c0_7] : memref<18x128xf32, #tpu.memory_space<vmem>>, vector<1x128xf32>
    %14 = vector.broadcast %13 : vector<1x128xf32> to vector<2x128xf32>
    %15 = arith.addf %12, %14 : vector<2x128xf32>
    %cst_8 = arith.constant 0.000000e+00 : f32
    %16 = vector.broadcast %cst_8 : f32 to vector<2x128xf32>
    %17 = arith.maximumf %15, %16 : vector<2x128xf32>
    %18 = arith.truncf %17 : vector<2x128xf32> to vector<2x128xbf16>
    %c1 = arith.constant 1 : index
    %c0_9 = arith.constant 0 : index
    %c0_10 = arith.constant 0 : index
    %19 = vector.load %arg1[%c1, %c0_9, %c0_10] : memref<8x128x128xbf16, #tpu.memory_space<vmem>>, vector<1x128x128xbf16>
    %20 = vector.shape_cast %19 : vector<1x128x128xbf16> to vector<128x128xbf16>
    %cst_11 = arith.constant dense<0.000000e+00> : vector<2x128xf32>
    %21 = tpu.matmul %18, %20, %cst_11 {dimension_numbers = #tpu.dot_dimension_numbers<[1], [0], [0], [1], [0, 0, 1, 1], [], []>} : vector<2x128xbf16>, vector<128x128xbf16>, vector<2x128xf32> -> vector<2x128xf32>
    %c1_12 = arith.constant 1 : index
    %c0_13 = arith.constant 0 : index
    %22 = vector.load %arg3[%c1_12, %c0_13] : memref<18x128xf32, #tpu.memory_space<vmem>>, vector<1x128xf32>
    %23 = vector.broadcast %22 : vector<1x128xf32> to vector<2x128xf32>
    %24 = arith.addf %21, %23 : vector<2x128xf32>
    %25 = arith.truncf %24 : vector<2x128xf32> to vector<2x128xbf16>
    %c0_14 = arith.constant 0 : index
    %c512 = arith.constant 512 : index
    %26 = vector.load %arg2[%c0_14, %c512] : memref<128x1024xbf16, #tpu.memory_space<vmem>>, vector<128x512xbf16>
    %cst_15 = arith.constant dense<0.000000e+00> : vector<2x512xf32>
    %27 = tpu.matmul %25, %26, %cst_15 {dimension_numbers = #tpu.dot_dimension_numbers<[1], [0], [0], [1], [0, 0, 1, 1], [], []>} : vector<2x128xbf16>, vector<128x512xbf16>, vector<2x512xf32> -> vector<2x512xf32>
    %c0_16 = arith.constant 0 : index
    %c0_17 = arith.constant 0 : index
    %28 = vector.load %arg0[%c0_16, %c0_17] : memref<2x128xf32, #tpu.memory_space<vmem>>, vector<2x128xf32>
    %29 = arith.truncf %28 : vector<2x128xf32> to vector<2x128xbf16>
    %c0_18 = arith.constant 0 : index
    %c0_19 = arith.constant 0 : index
    %30 = vector.load %arg2[%c0_18, %c0_19] : memref<128x1024xbf16, #tpu.memory_space<vmem>>, vector<128x256xbf16>
    %cst_20 = arith.constant dense<0.000000e+00> : vector<2x256xf32>
    %31 = tpu.matmul %29, %30, %cst_20 {dimension_numbers = #tpu.dot_dimension_numbers<[1], [0], [0], [1], [0, 0, 1, 1], [], []>} : vector<2x128xbf16>, vector<128x256xbf16>, vector<2x256xf32> -> vector<2x256xf32>
    %32 = vector.extract_strided_slice %31 {offsets = [0, 0], sizes = [2, 128], strides = [1, 1]} : vector<2x256xf32> to vector<2x128xf32>
    %c2 = arith.constant 2 : index
    %c0_21 = arith.constant 0 : index
    %33 = vector.load %arg3[%c2, %c0_21] : memref<18x128xf32, #tpu.memory_space<vmem>>, vector<1x128xf32>
    %34 = vector.broadcast %33 : vector<1x128xf32> to vector<2x128xf32>
    %35 = arith.addf %32, %34 : vector<2x128xf32>
    %cst_22 = arith.constant 0.000000e+00 : f32
    %36 = vector.broadcast %cst_22 : f32 to vector<2x128xf32>
    %37 = arith.maximumf %35, %36 : vector<2x128xf32>
    %38 = vector.extract_strided_slice %27 {offsets = [0, 0], sizes = [2, 128], strides = [1, 1]} : vector<2x512xf32> to vector<2x128xf32>
    %39 = arith.addf %37, %38 : vector<2x128xf32>
    %c4 = arith.constant 4 : index
    %c0_23 = arith.constant 0 : index
    %40 = vector.load %arg3[%c4, %c0_23] : memref<18x128xf32, #tpu.memory_space<vmem>>, vector<1x128xf32>
    %41 = vector.broadcast %40 : vector<1x128xf32> to vector<2x128xf32>
    %42 = arith.addf %39, %41 : vector<2x128xf32>
    %43 = arith.truncf %42 : vector<2x128xf32> to vector<2x128xbf16>
    %c2_24 = arith.constant 2 : index
    %c0_25 = arith.constant 0 : index
    %c0_26 = arith.constant 0 : index
    %44 = vector.load %arg1[%c2_24, %c0_25, %c0_26] : memref<8x128x128xbf16, #tpu.memory_space<vmem>>, vector<1x128x128xbf16>
    %45 = vector.shape_cast %44 : vector<1x128x128xbf16> to vector<128x128xbf16>
    %cst_27 = arith.constant dense<0.000000e+00> : vector<2x128xf32>
    %46 = tpu.matmul %43, %45, %cst_27 {dimension_numbers = #tpu.dot_dimension_numbers<[1], [0], [0], [1], [0, 0, 1, 1], [], []>} : vector<2x128xbf16>, vector<128x128xbf16>, vector<2x128xf32> -> vector<2x128xf32>
    %c3 = arith.constant 3 : index
    %c0_28 = arith.constant 0 : index
    %47 = vector.load %arg3[%c3, %c0_28] : memref<18x128xf32, #tpu.memory_space<vmem>>, vector<1x128xf32>
    %48 = vector.broadcast %47 : vector<1x128xf32> to vector<2x128xf32>
    %49 = arith.addf %46, %48 : vector<2x128xf32>
    %cst_29 = arith.constant 0.000000e+00 : f32
    %50 = vector.broadcast %cst_29 : f32 to vector<2x128xf32>
    %51 = arith.maximumf %49, %50 : vector<2x128xf32>
    %52 = vector.extract_strided_slice %31 {offsets = [0, 128], sizes = [2, 128], strides = [1, 1]} : vector<2x256xf32> to vector<2x128xf32>
    %53 = arith.addf %51, %52 : vector<2x128xf32>
    %c5 = arith.constant 5 : index
    %c0_30 = arith.constant 0 : index
    %54 = vector.load %arg3[%c5, %c0_30] : memref<18x128xf32, #tpu.memory_space<vmem>>, vector<1x128xf32>
    %55 = vector.broadcast %54 : vector<1x128xf32> to vector<2x128xf32>
    %56 = arith.addf %53, %55 : vector<2x128xf32>
    %57 = arith.truncf %56 : vector<2x128xf32> to vector<2x128xbf16>
    %c3_31 = arith.constant 3 : index
    %c0_32 = arith.constant 0 : index
    %c0_33 = arith.constant 0 : index
    %58 = vector.load %arg1[%c3_31, %c0_32, %c0_33] : memref<8x128x128xbf16, #tpu.memory_space<vmem>>, vector<1x128x128xbf16>
    %59 = vector.shape_cast %58 : vector<1x128x128xbf16> to vector<128x128xbf16>
    %cst_34 = arith.constant dense<0.000000e+00> : vector<2x128xf32>
    %60 = tpu.matmul %57, %59, %cst_34 {dimension_numbers = #tpu.dot_dimension_numbers<[1], [0], [0], [1], [0, 0, 1, 1], [], []>} : vector<2x128xbf16>, vector<128x128xbf16>, vector<2x128xf32> -> vector<2x128xf32>
    %c6 = arith.constant 6 : index
    %c0_35 = arith.constant 0 : index
    %61 = vector.load %arg3[%c6, %c0_35] : memref<18x128xf32, #tpu.memory_space<vmem>>, vector<1x128xf32>
    %62 = vector.broadcast %61 : vector<1x128xf32> to vector<2x128xf32>
    %63 = arith.addf %60, %62 : vector<2x128xf32>
    %cst_36 = arith.constant 0.000000e+00 : f32
    %64 = vector.broadcast %cst_36 : f32 to vector<2x128xf32>
    %65 = arith.maximumf %63, %64 : vector<2x128xf32>
    %66 = vector.extract_strided_slice %27 {offsets = [0, 128], sizes = [2, 128], strides = [1, 1]} : vector<2x512xf32> to vector<2x128xf32>
    %67 = arith.addf %65, %66 : vector<2x128xf32>
    %c8 = arith.constant 8 : index
    %c0_37 = arith.constant 0 : index
    %68 = vector.load %arg3[%c8, %c0_37] : memref<18x128xf32, #tpu.memory_space<vmem>>, vector<1x128xf32>
    %69 = vector.broadcast %68 : vector<1x128xf32> to vector<2x128xf32>
    %70 = arith.addf %67, %69 : vector<2x128xf32>
    %71 = arith.truncf %70 : vector<2x128xf32> to vector<2x128xbf16>
    %c4_38 = arith.constant 4 : index
    %c0_39 = arith.constant 0 : index
    %c0_40 = arith.constant 0 : index
    %72 = vector.load %arg1[%c4_38, %c0_39, %c0_40] : memref<8x128x128xbf16, #tpu.memory_space<vmem>>, vector<1x128x128xbf16>
    %73 = vector.shape_cast %72 : vector<1x128x128xbf16> to vector<128x128xbf16>
    %cst_41 = arith.constant dense<0.000000e+00> : vector<2x128xf32>
    %74 = tpu.matmul %71, %73, %cst_41 {dimension_numbers = #tpu.dot_dimension_numbers<[1], [0], [0], [1], [0, 0, 1, 1], [], []>} : vector<2x128xbf16>, vector<128x128xbf16>, vector<2x128xf32> -> vector<2x128xf32>
    %c7 = arith.constant 7 : index
    %c0_42 = arith.constant 0 : index
    %75 = vector.load %arg3[%c7, %c0_42] : memref<18x128xf32, #tpu.memory_space<vmem>>, vector<1x128xf32>
    %76 = vector.broadcast %75 : vector<1x128xf32> to vector<2x128xf32>
    %77 = arith.addf %74, %76 : vector<2x128xf32>
    %cst_43 = arith.constant 0.000000e+00 : f32
    %78 = vector.broadcast %cst_43 : f32 to vector<2x128xf32>
    %79 = arith.maximumf %77, %78 : vector<2x128xf32>
    %80 = arith.addf %79, %56 : vector<2x128xf32>
    %81 = arith.truncf %80 : vector<2x128xf32> to vector<2x128xbf16>
    %c5_44 = arith.constant 5 : index
    %c0_45 = arith.constant 0 : index
    %c0_46 = arith.constant 0 : index
    %82 = vector.load %arg1[%c5_44, %c0_45, %c0_46] : memref<8x128x128xbf16, #tpu.memory_space<vmem>>, vector<1x128x128xbf16>
    %83 = vector.shape_cast %82 : vector<1x128x128xbf16> to vector<128x128xbf16>
    %cst_47 = arith.constant dense<0.000000e+00> : vector<2x128xf32>
    %84 = tpu.matmul %81, %83, %cst_47 {dimension_numbers = #tpu.dot_dimension_numbers<[1], [0], [0], [1], [0, 0, 1, 1], [], []>} : vector<2x128xbf16>, vector<128x128xbf16>, vector<2x128xf32> -> vector<2x128xf32>
    %c9 = arith.constant 9 : index
    %c0_48 = arith.constant 0 : index
    %85 = vector.load %arg3[%c9, %c0_48] : memref<18x128xf32, #tpu.memory_space<vmem>>, vector<1x128xf32>
    %86 = vector.broadcast %85 : vector<1x128xf32> to vector<2x128xf32>
    %87 = arith.addf %84, %86 : vector<2x128xf32>
    %cst_49 = arith.constant 0.000000e+00 : f32
    %88 = vector.broadcast %cst_49 : f32 to vector<2x128xf32>
    %89 = arith.maximumf %87, %88 : vector<2x128xf32>
    %90 = vector.extract_strided_slice %27 {offsets = [0, 256], sizes = [2, 128], strides = [1, 1]} : vector<2x512xf32> to vector<2x128xf32>
    %91 = arith.addf %89, %90 : vector<2x128xf32>
    %c11 = arith.constant 11 : index
    %c0_50 = arith.constant 0 : index
    %92 = vector.load %arg3[%c11, %c0_50] : memref<18x128xf32, #tpu.memory_space<vmem>>, vector<1x128xf32>
    %93 = vector.broadcast %92 : vector<1x128xf32> to vector<2x128xf32>
    %94 = arith.addf %91, %93 : vector<2x128xf32>
    %95 = arith.truncf %94 : vector<2x128xf32> to vector<2x128xbf16>
    %c6_51 = arith.constant 6 : index
    %c0_52 = arith.constant 0 : index
    %c0_53 = arith.constant 0 : index
    %96 = vector.load %arg1[%c6_51, %c0_52, %c0_53] : memref<8x128x128xbf16, #tpu.memory_space<vmem>>, vector<1x128x128xbf16>
    %97 = vector.shape_cast %96 : vector<1x128x128xbf16> to vector<128x128xbf16>
    %cst_54 = arith.constant dense<0.000000e+00> : vector<2x128xf32>
    %98 = tpu.matmul %95, %97, %cst_54 {dimension_numbers = #tpu.dot_dimension_numbers<[1], [0], [0], [1], [0, 0, 1, 1], [], []>} : vector<2x128xbf16>, vector<128x128xbf16>, vector<2x128xf32> -> vector<2x128xf32>
    %c10 = arith.constant 10 : index
    %c0_55 = arith.constant 0 : index
    %99 = vector.load %arg3[%c10, %c0_55] : memref<18x128xf32, #tpu.memory_space<vmem>>, vector<1x128xf32>
    %100 = vector.broadcast %99 : vector<1x128xf32> to vector<2x128xf32>
    %101 = arith.addf %98, %100 : vector<2x128xf32>
    %cst_56 = arith.constant 0.000000e+00 : f32
    %102 = vector.broadcast %cst_56 : f32 to vector<2x128xf32>
    %103 = arith.maximumf %101, %102 : vector<2x128xf32>
    %104 = arith.addf %103, %80 : vector<2x128xf32>
    %105 = arith.truncf %104 : vector<2x128xf32> to vector<2x128xbf16>
    %c0_57 = arith.constant 0 : index
    %c256 = arith.constant 256 : index
    %106 = vector.load %arg2[%c0_57, %c256] : memref<128x1024xbf16, #tpu.memory_space<vmem>>, vector<128x256xbf16>
    %cst_58 = arith.constant dense<0.000000e+00> : vector<2x256xf32>
    %107 = tpu.matmul %105, %106, %cst_58 {dimension_numbers = #tpu.dot_dimension_numbers<[1], [0], [0], [1], [0, 0, 1, 1], [], []>} : vector<2x128xbf16>, vector<128x256xbf16>, vector<2x256xf32> -> vector<2x256xf32>
    %108 = vector.extract_strided_slice %107 {offsets = [0, 0], sizes = [2, 128], strides = [1, 1]} : vector<2x256xf32> to vector<2x128xf32>
    %c12 = arith.constant 12 : index
    %c0_59 = arith.constant 0 : index
    %109 = vector.load %arg3[%c12, %c0_59] : memref<18x128xf32, #tpu.memory_space<vmem>>, vector<1x128xf32>
    %110 = vector.broadcast %109 : vector<1x128xf32> to vector<2x128xf32>
    %111 = arith.addf %108, %110 : vector<2x128xf32>
    %cst_60 = arith.constant 0.000000e+00 : f32
    %112 = vector.broadcast %cst_60 : f32 to vector<2x128xf32>
    %113 = arith.maximumf %111, %112 : vector<2x128xf32>
    %114 = vector.extract_strided_slice %27 {offsets = [0, 384], sizes = [2, 128], strides = [1, 1]} : vector<2x512xf32> to vector<2x128xf32>
    %115 = arith.addf %113, %114 : vector<2x128xf32>
    %c14 = arith.constant 14 : index
    %c0_61 = arith.constant 0 : index
    %116 = vector.load %arg3[%c14, %c0_61] : memref<18x128xf32, #tpu.memory_space<vmem>>, vector<1x128xf32>
    %117 = vector.broadcast %116 : vector<1x128xf32> to vector<2x128xf32>
    %118 = arith.addf %115, %117 : vector<2x128xf32>
    %119 = arith.truncf %118 : vector<2x128xf32> to vector<2x128xbf16>
    %c7_62 = arith.constant 7 : index
    %c0_63 = arith.constant 0 : index
    %c0_64 = arith.constant 0 : index
    %120 = vector.load %arg1[%c7_62, %c0_63, %c0_64] : memref<8x128x128xbf16, #tpu.memory_space<vmem>>, vector<1x128x128xbf16>
    %121 = vector.shape_cast %120 : vector<1x128x128xbf16> to vector<128x128xbf16>
    %cst_65 = arith.constant dense<0.000000e+00> : vector<2x128xf32>
    %122 = tpu.matmul %119, %121, %cst_65 {dimension_numbers = #tpu.dot_dimension_numbers<[1], [0], [0], [1], [0, 0, 1, 1], [], []>} : vector<2x128xbf16>, vector<128x128xbf16>, vector<2x128xf32> -> vector<2x128xf32>
    %c13 = arith.constant 13 : index
    %c0_66 = arith.constant 0 : index
    %123 = vector.load %arg3[%c13, %c0_66] : memref<18x128xf32, #tpu.memory_space<vmem>>, vector<1x128xf32>
    %124 = vector.broadcast %123 : vector<1x128xf32> to vector<2x128xf32>
    %125 = arith.addf %122, %124 : vector<2x128xf32>
    %cst_67 = arith.constant 0.000000e+00 : f32
    %126 = vector.broadcast %cst_67 : f32 to vector<2x128xf32>
    %127 = arith.maximumf %125, %126 : vector<2x128xf32>
    %128 = vector.extract_strided_slice %107 {offsets = [0, 128], sizes = [2, 128], strides = [1, 1]} : vector<2x256xf32> to vector<2x128xf32>
    %129 = arith.addf %127, %128 : vector<2x128xf32>
    %c15 = arith.constant 15 : index
    %c0_68 = arith.constant 0 : index
    %130 = vector.load %arg3[%c15, %c0_68] : memref<18x128xf32, #tpu.memory_space<vmem>>, vector<1x128xf32>
    %131 = vector.broadcast %130 : vector<1x128xf32> to vector<2x128xf32>
    %132 = arith.addf %129, %131 : vector<2x128xf32>
    %133 = vector.extract_strided_slice %132 {offsets = [0, 0], sizes = [2, 16], strides = [1, 1]} : vector<2x128xf32> to vector<2x16xf32>
    %c0_69 = arith.constant 0 : index
    %c0_70 = arith.constant 0 : index
    %134 = vector.load %arg4[%c0_69, %c0_70] : memref<2x16xf32, #tpu.memory_space<vmem>>, vector<2x16xf32>
    tpu.vector_store %arg4[%c0_69, %c0_70], %133 {strides = array<i32>} : memref<2x16xf32, #tpu.memory_space<vmem>>, vector<2x16xf32>,
    return
  }
}

</mosaic_0001>

<llo_original>
// kernel: latent_unet_forward.1
$region0: #{latent_unet_forward.1}
  #allocation0 [shape = 'u32[]', space=smem, size = 0x4, offset = 0x4, fixed_abs, tag = 'smem constant byte address 0x4 - core index']
  #allocation1 [shape = 'u32[72,128]{1,0:T(1,128)}', space=vmem, size = 0x9000, scoped, tag = 'internal scratch']
  %s0 = inlined_call_operand.vmem [shape: f32[2,128], index: 0, kind: input, shape index: {}]
  %s1 = inlined_call_operand.hbm [shape: bf16[8,128,128], index: 1, kind: input, shape index: {}]
  %s2 = inlined_call_operand.hbm [shape: bf16[128,1024], index: 2, kind: input, shape index: {}]
  %s3 = inlined_call_operand.vmem [shape: f32[18,128], index: 3, kind: input, shape index: {}]
  %s4 = inlined_call_operand.hbm [shape: f32[2,16], index: 4, kind: output, shape index: {}]
  %s5 = sld [smem:[#allocation0]]
  $region34: #{latent_unet_forward.1} parent=0
    _
  %s7 = ssub.s32 1, %s5
  %s8 = scalar_select 0, %s7, %s5
  $region1: #{latent_unet_forward.1} parent=0
    #allocation2 [shape = 'u8[262144]{0}', space=vmem, size = 0x40000, scoped, tag = 'input window, operand 1, single buffered']
    #allocation3 [shape = 's32[1]{0}', space=sflag, size = 0x4, scoped, tag = 'scoped memory for latent_unet_forward.1']
    #allocation4 [shape = 's32[1]{0}', space=sflag, size = 0x4, scoped, tag = 'scoped memory for latent_unet_forward.1']
    #allocation5 [shape = 'u8[262144]{0}', space=vmem, size = 0x40000, scoped, tag = 'input window, operand 2, single buffered']
    #allocation6 [shape = 's32[1]{0}', space=sflag, size = 0x4, scoped, tag = 'scoped memory for latent_unet_forward.1']
    #allocation7 [shape = 'u8[1024]{0}', space=vmem, size = 0x400, scoped, tag = 'output window, operand 0, single buffered']
    %9 = vsyncpa [#allocation3], 0
    %10 = vsyncpa [#allocation6], 0
    %11 = vsyncpa [#allocation4], 0
    // Predicated region
    $region2: #{latent_unet_forward.1} parent=1 // pred_check
      _
    $region3: #{latent_unet_forward.1} parent=1 // pred_check_branch
      %13 = sbr.rel (0) target = $region5
    $region4: #{latent_unet_forward.1} parent=1 // pred_region
      _
    $region5: #{latent_unet_forward.1} parent=1 // pred_fallthru
      _
    // Predicated region
    $region6: #{latent_unet_forward.1} parent=1 // pred_check
      _
    $region7: #{latent_unet_forward.1} parent=1 // pred_check_branch
      %15 = sbr.rel (0) target = $region9
    $region8: #{latent_unet_forward.1} parent=1 // pred_region
      %17 = vsyncadd [#allocation3], 0
      %s18 = sshll.u32 %s1, 4
      %s19 = int_to_ptr.hbm [resolvable:$true] %s18
      %s20 = sshll.u32 [#allocation2], 4
      %s21 = int_to_ptr.vmem [resolvable:$true] %s20
      %26 = dma.hbm_to_vmem [thread:$0]  %s19, 8192, %s21, [#allocation3], 64, 64, 4
    $region9: #{latent_unet_forward.1} parent=1 // pred_fallthru
      _
    // Predicated region
    $region10: #{latent_unet_forward.1} parent=1 // pred_check
      _
    $region11: #{latent_unet_forward.1} parent=1 // pred_check_branch
      %28 = sbr.rel (0) target = $region13
    $region12: #{latent_unet_forward.1} parent=1 // pred_region
      %30 = vsyncadd [#allocation6], 0
      %s31 = sshll.u32 %s2, 4
      %s32 = int_to_ptr.hbm [resolvable:$true] %s31
      %s33 = sshll.u32 [#allocation5], 4
      %s34 = int_to_ptr.vmem [resolvable:$true] %s33
      %39 = dma.hbm_to_vmem [thread:$0]  %s32, 8192, %s34, [#allocation6], 512, 512, 32
    $region13: #{latent_unet_forward.1} parent=1 // pred_fallthru
      _
    // Predicated region
    $region14: #{latent_unet_forward.1} parent=1 // pred_check
      _
    $region15: #{latent_unet_forward.1} parent=1 // pred_check_branch
      %41 = sbr.rel (0) target = $region17
    $region16: #{latent_unet_forward.1} parent=1 // pred_region
      _
    $region17: #{latent_unet_forward.1} parent=1 // pred_fallthru
      _
    // Predicated region
    $region18: #{latent_unet_forward.1} parent=1 // pred_check
      _
    $region19: #{latent_unet_forward.1} parent=1 // pred_check_branch
      %43 = sbr.rel (0) target = $region21
    $region20: #{latent_unet_forward.1} parent=1 // pred_region
      %45 = dma.done [#allocation3], 8192
    $region21: #{latent_unet_forward.1} parent=1 // pred_fallthru
      _
    // Predicated region
    $region22: #{latent_unet_forward.1} parent=1 // pred_check
      _
    $region23: #{latent_unet_forward.1} parent=1 // pred_check_branch
      %47 = sbr.rel (0) target = $region25
    $region24: #{latent_unet_forward.1} parent=1 // pred_region
      %49 = dma.done [#allocation6], 8192
    $region25: #{latent_unet_forward.1} parent=1 // pred_fallthru
      _
    %v50 = vld [vmem:[%s0] sm:$0x3]
    %v51 = vld [vmem:[%s3 + $0x10] sm:$0x1]
    %53 = vset.pattern.permute.xlu0 16
    %54 = vperm.xlu0 %53, %v50
    %v55 = vpop.permute.xlu0 %54
    %v57 = vperm.slane %v51, 0
    %v58 = vmul.f32 %v55, %v57
    %v59 = vld [vmem:[%s3 + $0x11] sm:$0x1]
    %v60 = vperm.slane %v59, 0
    %v61 = vadd.f32 %v58, %v60
    %v62 = vand.u32 2147483647, %v61
    %vm63 = vcmp.le.f32.partialorder %v62, 0.7853982
    %vm64 = vcmp.lt.s32.totalorder %v61, 0
    %v65 = vand.u32 %v61, 2139095040
    %v66 = vshrl.u32 %v65, 23
    %v67 = vsub.s32 %v66, 127
    %v68 = vand.u32 2147483647, %v61
    %v69 = vand.u32 %v68, 8388607
    %v70 = vor.u32 %v69, 8388608
    %v71 = vsub.s32 0, %v70
    %v72 = vadd.s32 %v67, 1
    %vm73 = vcmp.gt.s32.totalorder %v72, 0
    %v74 = vsel %vm73, %v72, 0
    %v75 = vshrl.u32 %v74, 5
    %v76 = vand.u32 %v74, 31
    %v77 = vsub.s32 32, %v76
    %v78 = vshrl.u32 683565275, %v77
    %v79 = vshll.u32 683565275, %v76
    %v80 = vshrl.u32 2475754826, %v77
    %v81 = vor.u32 %v79, %v80
    %v82 = vshll.u32 2475754826, %v76
    %v83 = vshrl.u32 2131351028, %v77
    %v84 = vor.u32 %v82, %v83
    %v85 = vshll.u32 2131351028, %v76
    %v86 = vshrl.u32 2102212464, %v77
    %v87 = vor.u32 %v85, %v86
    %v88 = vshll.u32 2102212464, %v76
    %v89 = vshrl.u32 920167782, %v77
    %v90 = vor.u32 %v88, %v89
    %v91 = vshll.u32 920167782, %v76
    %v92 = vshrl.u32 1326507024, %v77
    %v93 = vor.u32 %v91, %v92
    %vm94 = vcmp.lt.s32.totalorder %v75, 1
    %vm95 = vcmp.lt.s32.totalorder %v75, 2
    %vm96 = vcmp.lt.s32.totalorder %v75, 3
    %vm97 = vcmp.lt.s32.totalorder %v75, 4
    %v98 = vsel %vm94, %v78, %v81
    %v99 = vsel %vm97, %v87, 2102212464
    %v100 = vsel %vm96, %v84, %v99
    %v101 = vsel %vm95, %v98, %v100
    %v102 = vsel %vm94, %v81, %v84
    %v103 = vsel %vm97, %v90, 920167782
    %v104 = vsel %vm96, %v87, %v103
    %v105 = vsel %vm95, %v102, %v104
    %v106 = vsel %vm94, %v84, %v87
    %v107 = vsel %vm97, %v93, 1326507024
    %v108 = vsel %vm96, %v90, %v107
    %v109 = vsel %vm95, %v106, %v108
    %v110 = vshll.u32 %v70, 8
    %v111 = vand.u32 %v110, 65535
    %v112 = vshrl.u32 %v110, 16
    %v113 = vand.u32 %v109, 65535
    %v114 = vshrl.u32 %v109, 16
    %v115 = vmul.u32 %v111, %v113
    %v116 = vmul.u32 %v111, %v114
    %v117 = vmul.u32 %v112, %v113
    %v118 = vmul.u32 %v112, %v114
    %v119 = vshll.u32 %v116, 16
    %v120 = vshrl.u32 %v116, 16
    %v121 = vshll.u32 %v117, 16
    %v122 = vshrl.u32 %v117, 16
    %vm123 = vc.u32 %v115, %v119
    %v124 = vsel %vm123, 1, 0
    %v125 = vadd.s32 %v115, %v119
    %v126 = vadd.s32 %v118, %v124
    %vm127 = vc.u32 %v125, %v121
    %v128 = vsel %vm127, 1, 0
    %v129 = vadd.s32 %v125, %v121
    %v130 = vadd.s32 %v126, %v128
    %v131 = vadd.s32 %v130, %v120
    %v132 = vadd.s32 %v131, %v122
    %v133 = vand.u32 %v110, 65535
    %v134 = vshrl.u32 %v110, 16
    %v135 = vand.u32 %v105, 65535
    %v136 = vshrl.u32 %v105, 16
    %v137 = vmul.u32 %v133, %v135
    %v138 = vmul.u32 %v133, %v136
    %v139 = vmul.u32 %v134, %v135
    %v140 = vmul.u32 %v134, %v136
    %v141 = vshll.u32 %v138, 16
    %v142 = vshrl.u32 %v138, 16
    %v143 = vshll.u32 %v139, 16
    %v144 = vshrl.u32 %v139, 16
    %vm145 = vc.u32 %v137, %v141
    %v146 = vsel %vm145, 1, 0
    %v147 = vadd.s32 %v137, %v141
    %v148 = vadd.s32 %v140, %v146
    %vm149 = vc.u32 %v147, %v143
    %v150 = vsel %vm149, 1, 0
    %v151 = vadd.s32 %v147, %v143
    %v152 = vadd.s32 %v148, %v150
    %v153 = vadd.s32 %v152, %v142
    %v154 = vadd.s32 %v153, %v144
    %v155 = vmul.u32 %v110, %v101
    %v156 = vadd.s32 %v132, %v151
    %vm157 = vc.u32 %v132, %v151
    %v158 = vadd.s32 %v154, 1
    %v159 = vsel %vm157, %v158, %v154
    %v160 = vadd.s32 %v155, %v159
    %v161 = vadd.s32 %v160, 536870912
    %v162 = vshrl.u32 %v161, 30
    %v163 = vshll.u32 %v162, 30
    %v164 = vsub.s32 %v160, %v163
    %vm165 = vcmp.lt.s32.totalorder %v164, 0
    %v166 = vsub.s32 0, %v164
    %v167 = vsel %vm165, %v166, %v164
    %v168 = vclz %v167
    %v169 = vsub.s32 %v168, 2
    %vm170 = vcmp.gt.s32.totalorder 0, %v169
    %v171 = vsel %vm170, 0, %v169
    %v172 = vsub.s32 32, %v171
    %v173 = vshll.u32 %v164, %v171
    %v174 = vshrl.u32 %v156, %v172
    %v175 = vor.u32 %v173, %v174
    %v176 = vsub.s32 4294967266, %v171
    %v177 = vadd.s32 %v176, 127
    %v178 = vshll.u32 %v177, 23
    %v179 = vor.u32 4788187, %v178
    %v180 = vand.u32 2147483647, %v179
    %v182 = vcvt.s32.f32 %v175
    %v183 = vmul.f32 %v182, %v180
    %v184 = vxor.u32 %v183, 2147483648
    %v185 = vsel %vm64, %v184, %v183
    %v186 = vsub.s32 4, %v162
    %v187 = vsel %vm64, %v186, %v162
    %v188 = vsel %vm63, %v61, %v185
    %v189 = vsel %vm63, 0, %v187
    %v190 = vmul.f32 %v188, %v188
    %v191 = vmul.f32 %v190, -0.001358992
    %v192 = vadd.f32 %v191, 0.041655596
    %v193 = vmul.f32 %v190, %v192
    %v194 = vadd.f32 %v193, -0.4999988
    %v195 = vmul.f32 %v190, %v194
    %v196 = vadd.f32 1.0, %v195
    %v197 = vmul.f32 %v188, %v188
    %v198 = vmul.f32 %v197, -0.00019511016
    %v199 = vadd.f32 %v198, 0.008332121
    %v200 = vmul.f32 %v197, %v199
    %v201 = vadd.f32 %v200, -0.16666654
    %v202 = vmul.f32 %v197, %v201
    %v203 = vadd.f32 %v202, 1.0
    %v204 = vmul.f32 %v203, %v188
    %vm205 = vweird.f32 %v61
    %v206 = vadd.s32 %v189, 3
    %v207 = vand.u32 %v206, 3
    %vm208 = vcmp.lt.s32.totalorder %v207, 2
    %vm209 = vcmp.eq.s32.totalorder %v207, 0
    %v210 = vxor.u32 %v204, 2147483648
    %v211 = vsel %vm209, %v196, %v210
    %vm212 = vcmp.eq.s32.totalorder %v207, 2
    %v213 = vxor.u32 %v196, 2147483648
    %v214 = vsel %vm212, %v213, %v204
    %v215 = vsel %vm208, %v211, %v214
    %v216 = vsel %vm205, nan, %v215
    %v217 = vpack.c.bf16 %v216, %v216
    %v218 = vld [vmem:[#allocation2] sm:$0xf]
    %v219 = vld [vmem:[#allocation2 + $0x4] sm:$0xf]
    %v220 = vld [vmem:[#allocation2 + $0x8] sm:$0xf]
    %v221 = vld [vmem:[#allocation2 + $0xc] sm:$0xf]
    %v222 = vld [vmem:[#allocation2 + $0x10] sm:$0xf]
    %v223 = vld [vmem:[#allocation2 + $0x14] sm:$0xf]
    %v224 = vld [vmem:[#allocation2 + $0x18] sm:$0xf]
    %v225 = vld [vmem:[#allocation2 + $0x1c] sm:$0xf]
    %v226 = vld [vmem:[#allocation2 + $0x20] sm:$0xf]
    %v227 = vld [vmem:[#allocation2 + $0x24] sm:$0xf]
    %v228 = vld [vmem:[#allocation2 + $0x28] sm:$0xf]
    %v229 = vld [vmem:[#allocation2 + $0x2c] sm:$0xf]
    %v230 = vld [vmem:[#allocation2 + $0x30] sm:$0xf]
    %v231 = vld [vmem:[#allocation2 + $0x34] sm:$0xf]
    %v232 = vld [vmem:[#allocation2 + $0x38] sm:$0xf]
    %v233 = vld [vmem:[#allocation2 + $0x3c] sm:$0xf]
    %v234 = vld [vmem:[%s3] sm:$0x1]
    %v235 = vperm.slane %v234, 0
    %v252 = vunpack.c.l.b16 %v218
    %v253 = vunpack.c.l.b16 %v219
    %v254 = vunpack.c.l.b16 %v220
    %v255 = vunpack.c.l.b16 %v221
    %v256 = vunpack.c.l.b16 %v222
    %v257 = vunpack.c.l.b16 %v223
    %v258 = vunpack.c.l.b16 %v224
    %v259 = vunpack.c.l.b16 %v225
    %v260 = vunpack.c.l.b16 %v226
    %v261 = vunpack.c.l.b16 %v227
    %v262 = vunpack.c.l.b16 %v228
    %v263 = vunpack.c.l.b16 %v229
    %v264 = vunpack.c.l.b16 %v230
    %v265 = vunpack.c.l.b16 %v231
    %v266 = vunpack.c.l.b16 %v232
    %v267 = vunpack.c.l.b16 %v233
    %v268 = vpack.c.b16 %v253, %v252
    %v269 = vpack.c.b16 %v255, %v254
    %v270 = vpack.c.b16 %v257, %v256
    %v271 = vpack.c.b16 %v259, %v258
    %v272 = vpack.c.b16 %v261, %v260
    %v273 = vpack.c.b16 %v263, %v262
    %v274 = vpack.c.b16 %v265, %v264
    %v275 = vpack.c.b16 %v267, %v266
    %284 = vmatpush.bf16.msra.mxu0 %v275
    %285 = vmatpush.bf16.msra.mxu0 %v274
    %286 = vmatpush.bf16.msra.mxu0 %v273
    %287 = vmatpush.bf16.msra.mxu0 %v272
    %288 = vmatpush.bf16.msra.mxu0 %v271
    %289 = vmatpush.bf16.msra.mxu0 %v270
    %290 = vmatpush.bf16.msra.mxu0 %v269
    %291 = vmatpush.bf16.msra.mxu0 %v268
    %292 = vmatmul.bf16.gmra.mxu0 %v217
    %v293 = vpop.f32.mrf.mxu0
    %v294 = vadd.f32 %v235, %v293
    %v295 = vpop.f32.mrf.mxu0
    %296 = vdwg.mxu0
    %v297 = vmax.f32 %v294, 0.0
    %v298 = vpack.c.bf16 %v297, %v297
    %s299 = scalar_lea.vmem [#allocation2], 64
    %v300 = vld [vmem:[%s299] sm:$0xf]
    %v301 = vld [vmem:[%s299 + $0x4] sm:$0xf]
    %v302 = vld [vmem:[%s299 + $0x8] sm:$0xf]
    %v303 = vld [vmem:[%s299 + $0xc] sm:$0xf]
    %v304 = vld [vmem:[%s299 + $0x10] sm:$0xf]
    %v305 = vld [vmem:[%s299 + $0x14] sm:$0xf]
    %v306 = vld [vmem:[%s299 + $0x18] sm:$0xf]
    %v307 = vld [vmem:[%s299 + $0x1c] sm:$0xf]
    %v308 = vld [vmem:[%s299 + $0x20] sm:$0xf]
    %v309 = vld [vmem:[%s299 + $0x24] sm:$0xf]
    %v310 = vld [vmem:[%s299 + $0x28] sm:$0xf]
    %v311 = vld [vmem:[%s299 + $0x2c] sm:$0xf]
    %v312 = vld [vmem:[%s299 + $0x30] sm:$0xf]
    %v313 = vld [vmem:[%s299 + $0x34] sm:$0xf]
    %v314 = vld [vmem:[%s299 + $0x38] sm:$0xf]
    %v315 = vld [vmem:[%s299 + $0x3c] sm:$0xf]
    %v316 = vld [vmem:[%s3 + $0x1] sm:$0x1]
    %v317 = vperm.slane %v316, 0
    %v334 = vunpack.c.l.b16 %v300
    %v335 = vunpack.c.l.b16 %v301
    %v336 = vunpack.c.l.b16 %v302
    %v337 = vunpack.c.l.b16 %v303
    %v338 = vunpack.c.l.b16 %v304
    %v339 = vunpack.c.l.b16 %v305
    %v340 = vunpack.c.l.b16 %v306
    %v341 = vunpack.c.l.b16 %v307
    %v342 = vunpack.c.l.b16 %v308
    %v343 = vunpack.c.l.b16 %v309
    %v344 = vunpack.c.l.b16 %v310
    %v345 = vunpack.c.l.b16 %v311
    %v346 = vunpack.c.l.b16 %v312
    %v347 = vunpack.c.l.b16 %v313
    %v348 = vunpack.c.l.b16 %v314
    %v349 = vunpack.c.l.b16 %v315
    %v350 = vpack.c.b16 %v335, %v334
    %v351 = vpack.c.b16 %v337, %v336
    %v352 = vpack.c.b16 %v339, %v338
    %v353 = vpack.c.b16 %v341, %v340
    %v354 = vpack.c.b16 %v343, %v342
    %v355 = vpack.c.b16 %v345, %v344
    %v356 = vpack.c.b16 %v347, %v346
    %v357 = vpack.c.b16 %v349, %v348
    %366 = vmatpush.bf16.msra.mxu0 %v357
    %367 = vmatpush.bf16.msra.mxu0 %v356
    %368 = vmatpush.bf16.msra.mxu0 %v355
    %369 = vmatpush.bf16.msra.mxu0 %v354
    %370 = vmatpush.bf16.msra.mxu0 %v353
    %371 = vmatpush.bf16.msra.mxu0 %v352
    %372 = vmatpush.bf16.msra.mxu0 %v351
    %373 = vmatpush.bf16.msra.mxu0 %v350
    %374 = vmatmul.bf16.gmra.mxu0 %v298
    %v375 = vpop.f32.mrf.mxu0
    %v376 = vadd.f32 %v317, %v375
    %v377 = vpop.f32.mrf.mxu0
    %378 = vdwg.mxu0
    %v379 = vpack.c.bf16 %v376, %v376
    %v380 = vld [vmem:[#allocation5 + $0x10] sm:$0xff]
    %v381 = vld [vmem:[#allocation5 + $0x18] sm:$0xff]
    %v382 = vld [vmem:[#allocation5 + $0x30] sm:$0xff]
    %v383 = vld [vmem:[#allocation5 + $0x38] sm:$0xff]
    %v384 = vld [vmem:[#allocation5 + $0x50] sm:$0xff]
    %v385 = vld [vmem:[#allocation5 + $0x58] sm:$0xff]
    %v386 = vld [vmem:[#allocation5 + $0x70] sm:$0xff]
    %v387 = vld [vmem:[#allocation5 + $0x78] sm:$0xff]
    %v388 = vld [vmem:[#allocation5 + $0x90] sm:$0xff]
    %v389 = vld [vmem:[#allocation5 + $0x98] sm:$0xff]
    %v390 = vld [vmem:[#allocation5 + $0xb0] sm:$0xff]
    %v391 = vld [vmem:[#allocation5 + $0xb8] sm:$0xff]
    %v392 = vld [vmem:[#allocation5 + $0xd0] sm:$0xff]
    %v393 = vld [vmem:[#allocation5 + $0xd8] sm:$0xff]
    %v394 = vld [vmem:[#allocation5 + $0xf0] sm:$0xff]
    %v395 = vld [vmem:[#allocation5 + $0xf8] sm:$0xff]
    %v396 = vld [vmem:[#allocation5 + $0x110] sm:$0xff]
    %v397 = vld [vmem:[#allocation5 + $0x118] sm:$0xff]
    %v398 = vld [vmem:[#allocation5 + $0x130] sm:$0xff]
    %v399 = vld [vmem:[#allocation5 + $0x138] sm:$0xff]
    %v400 = vld [vmem:[#allocation5 + $0x150] sm:$0xff]
    %v401 = vld [vmem:[#allocation5 + $0x158] sm:$0xff]
    %v402 = vld [vmem:[#allocation5 + $0x170] sm:$0xff]
    %v403 = vld [vmem:[#allocation5 + $0x178] sm:$0xff]
    %v404 = vld [vmem:[#allocation5 + $0x190] sm:$0xff]
    %v405 = vld [vmem:[#allocation5 + $0x198] sm:$0xff]
    %v406 = vld [vmem:[#allocation5 + $0x1b0] sm:$0xff]
    %v407 = vld [vmem:[#allocation5 + $0x1b8] sm:$0xff]
    %v408 = vld [vmem:[#allocation5 + $0x1d0] sm:$0xff]
    %v409 = vld [vmem:[#allocation5 + $0x1d8] sm:$0xff]
    %v410 = vld [vmem:[#allocation5 + $0x1f0] sm:$0xff]
    %v411 = vld [vmem:[#allocation5 + $0x1f8] sm:$0xff]
    %v444 = vunpack.c.l.b16 %v380
    %v445 = vunpack.c.h.b16 %v380
    %v446 = vunpack.c.l.b16 %v381
    %v447 = vunpack.c.h.b16 %v381
    %v448 = vunpack.c.l.b16 %v382
    %v449 = vunpack.c.h.b16 %v382
    %v450 = vunpack.c.l.b16 %v383
    %v451 = vunpack.c.h.b16 %v383
    %v452 = vunpack.c.l.b16 %v384
    %v453 = vunpack.c.h.b16 %v384
    %v454 = vunpack.c.l.b16 %v385
    %v455 = vunpack.c.h.b16 %v385
    %v456 = vunpack.c.l.b16 %v386
    %v457 = vunpack.c.h.b16 %v386
    %v458 = vunpack.c.l.b16 %v387
    %v459 = vunpack.c.h.b16 %v387
    %v460 = vunpack.c.l.b16 %v388
    %v461 = vunpack.c.h.b16 %v388
    %v462 = vunpack.c.l.b16 %v389
    %v463 = vunpack.c.h.b16 %v389
    %v464 = vunpack.c.l.b16 %v390
    %v465 = vunpack.c.h.b16 %v390
    %v466 = vunpack.c.l.b16 %v391
    %v467 = vunpack.c.h.b16 %v391
    %v468 = vunpack.c.l.b16 %v392
    %v469 = vunpack.c.h.b16 %v392
    %v470 = vunpack.c.l.b16 %v393
    %v471 = vunpack.c.h.b16 %v393
    %v472 = vunpack.c.l.b16 %v394
    %v473 = vunpack.c.h.b16 %v394
    %v474 = vunpack.c.l.b16 %v395
    %v475 = vunpack.c.h.b16 %v395
    %v476 = vunpack.c.l.b16 %v396
    %v477 = vunpack.c.h.b16 %v396
    %v478 = vunpack.c.l.b16 %v397
    %v479 = vunpack.c.h.b16 %v397
    %v480 = vunpack.c.l.b16 %v398
    %v481 = vunpack.c.h.b16 %v398
    %v482 = vunpack.c.l.b16 %v399
    %v483 = vunpack.c.h.b16 %v399
    %v484 = vunpack.c.l.b16 %v400
    %v485 = vunpack.c.h.b16 %v400
    %v486 = vunpack.c.l.b16 %v401
    %v487 = vunpack.c.h.b16 %v401
    %v488 = vunpack.c.l.b16 %v402
    %v489 = vunpack.c.h.b16 %v402
    %v490 = vunpack.c.l.b16 %v403
    %v491 = vunpack.c.h.b16 %v403
    %v492 = vunpack.c.l.b16 %v404
    %v493 = vunpack.c.h.b16 %v404
    %v494 = vunpack.c.l.b16 %v405
    %v495 = vunpack.c.h.b16 %v405
    %v496 = vunpack.c.l.b16 %v406
    %v497 = vunpack.c.h.b16 %v406
    %v498 = vunpack.c.l.b16 %v407
    %v499 = vunpack.c.h.b16 %v407
    %v500 = vunpack.c.l.b16 %v408
    %v501 = vunpack.c.h.b16 %v408
    %v502 = vunpack.c.l.b16 %v409
    %v503 = vunpack.c.h.b16 %v409
    %v504 = vunpack.c.l.b16 %v410
    %v505 = vunpack.c.h.b16 %v410
    %v506 = vunpack.c.l.b16 %v411
    %v507 = vunpack.c.h.b16 %v411
    %v508 = vpack.c.b16 %v448, %v444
    %v509 = vpack.c.b16 %v449, %v445
    %v510 = vpack.c.b16 %v450, %v446
    %v511 = vpack.c.b16 %v451, %v447
    %v512 = vpack.c.b16 %v456, %v452
    %v513 = vpack.c.b16 %v457, %v453
    %v514 = vpack.c.b16 %v458, %v454
    %v515 = vpack.c.b16 %v459, %v455
    %v516 = vpack.c.b16 %v464, %v460
    %v517 = vpack.c.b16 %v465, %v461
    %v518 = vpack.c.b16 %v466, %v462
    %v519 = vpack.c.b16 %v467, %v463
    %v520 = vpack.c.b16 %v472, %v468
    %v521 = vpack.c.b16 %v473, %v469
    %v522 = vpack.c.b16 %v474, %v470
    %v523 = vpack.c.b16 %v475, %v471
    %v524 = vpack.c.b16 %v480, %v476
    %v525 = vpack.c.b16 %v481, %v477
    %v526 = vpack.c.b16 %v482, %v478
    %v527 = vpack.c.b16 %v483, %v479
    %v528 = vpack.c.b16 %v488, %v484
    %v529 = vpack.c.b16 %v489, %v485
    %v530 = vpack.c.b16 %v490, %v486
    %v531 = vpack.c.b16 %v491, %v487
    %v532 = vpack.c.b16 %v496, %v492
    %v533 = vpack.c.b16 %v497, %v493
    %v534 = vpack.c.b16 %v498, %v494
    %v535 = vpack.c.b16 %v499, %v495
    %v536 = vpack.c.b16 %v504, %v500
    %v537 = vpack.c.b16 %v505, %v501
    %v538 = vpack.c.b16 %v506, %v502
    %v539 = vpack.c.b16 %v507, %v503
    %572 = vmatpush.bf16.msra.mxu0 %v536
    %573 = vmatpush.bf16.msra.mxu0 %v532
    %574 = vmatpush.bf16.msra.mxu0 %v528
    %575 = vmatpush.bf16.msra.mxu0 %v524
    %576 = vmatpush.bf16.msra.mxu0 %v520
    %577 = vmatpush.bf16.msra.mxu0 %v516
    %578 = vmatpush.bf16.msra.mxu0 %v512
    %579 = vmatpush.bf16.msra.mxu0 %v508
    %580 = vmatmul.bf16.gmra.mxu0 %v379
    %v581 = vpop.f32.mrf.mxu0
    %v582 = vadd.f32 0.0, %v581
    %v583 = vpop.f32.mrf.mxu0
    %584 = vdwg.mxu0
    %585 = vmatpush.bf16.msra.mxu0 %v537
    %586 = vmatpush.bf16.msra.mxu0 %v533
    %587 = vmatpush.bf16.msra.mxu0 %v529
    %588 = vmatpush.bf16.msra.mxu0 %v525
    %589 = vmatpush.bf16.msra.mxu0 %v521
    %590 = vmatpush.bf16.msra.mxu0 %v517
    %591 = vmatpush.bf16.msra.mxu0 %v513
    %592 = vmatpush.bf16.msra.mxu0 %v509
    %593 = vmatmul.bf16.gmra.mxu0 %v379
    %v594 = vpop.f32.mrf.mxu0
    %v595 = vadd.f32 0.0, %v594
    %v596 = vpop.f32.mrf.mxu0
    %597 = vdwg.mxu0
    %598 = vmatpush.bf16.msra.mxu0 %v538
    %599 = vmatpush.bf16.msra.mxu0 %v534
    %600 = vmatpush.bf16.msra.mxu0 %v530
    %601 = vmatpush.bf16.msra.mxu0 %v526
    %602 = vmatpush.bf16.msra.mxu0 %v522
    %603 = vmatpush.bf16.msra.mxu0 %v518
    %604 = vmatpush.bf16.msra.mxu0 %v514
    %605 = vmatpush.bf16.msra.mxu0 %v510
    %606 = vmatmul.bf16.gmra.mxu0 %v379
    %v607 = vpop.f32.mrf.mxu0
    %v608 = vadd.f32 0.0, %v607
    %v609 = vpop.f32.mrf.mxu0
    %610 = vdwg.mxu0
    %611 = vmatpush.bf16.msra.mxu0 %v539
    %612 = vmatpush.bf16.msra.mxu0 %v535
    %613 = vmatpush.bf16.msra.mxu0 %v531
    %614 = vmatpush.bf16.msra.mxu0 %v527
    %615 = vmatpush.bf16.msra.mxu0 %v523
    %616 = vmatpush.bf16.msra.mxu0 %v519
    %617 = vmatpush.bf16.msra.mxu0 %v515
    %618 = vmatpush.bf16.msra.mxu0 %v511
    %619 = vmatmul.bf16.gmra.mxu0 %v379
    %v620 = vpop.f32.mrf.mxu0
    %v621 = vadd.f32 0.0, %v620
    %v622 = vpop.f32.mrf.mxu0
    %623 = vdwg.mxu0
    %v624 = vpack.c.bf16 %v50, %v50
    %v625 = vld [vmem:[#allocation5] sm:$0xff]
    %v626 = vld [vmem:[#allocation5 + $0x20] sm:$0xff]
    %v627 = vld [vmem:[#allocation5 + $0x40] sm:$0xff]
    %v628 = vld [vmem:[#allocation5 + $0x60] sm:$0xff]
    %v629 = vld [vmem:[#allocation5 + $0x80] sm:$0xff]
    %v630 = vld [vmem:[#allocation5 + $0xa0] sm:$0xff]
    %v631 = vld [vmem:[#allocation5 + $0xc0] sm:$0xff]
    %v632 = vld [vmem:[#allocation5 + $0xe0] sm:$0xff]
    %v633 = vld [vmem:[#allocation5 + $0x100] sm:$0xff]
    %v634 = vld [vmem:[#allocation5 + $0x120] sm:$0xff]
    %v635 = vld [vmem:[#allocation5 + $0x140] sm:$0xff]
    %v636 = vld [vmem:[#allocation5 + $0x160] sm:$0xff]
    %v637 = vld [vmem:[#allocation5 + $0x180] sm:$0xff]
    %v638 = vld [vmem:[#allocation5 + $0x1a0] sm:$0xff]
    %v639 = vld [vmem:[#allocation5 + $0x1c0] sm:$0xff]
    %v640 = vld [vmem:[#allocation5 + $0x1e0] sm:$0xff]
    %v657 = vunpack.c.l.b16 %v625
    %v658 = vunpack.c.h.b16 %v625
    %v659 = vunpack.c.l.b16 %v626
    %v660 = vunpack.c.h.b16 %v626
    %v661 = vunpack.c.l.b16 %v627
    %v662 = vunpack.c.h.b16 %v627
    %v663 = vunpack.c.l.b16 %v628
    %v664 = vunpack.c.h.b16 %v628
    %v665 = vunpack.c.l.b16 %v629
    %v666 = vunpack.c.h.b16 %v629
    %v667 = vunpack.c.l.b16 %v630
    %v668 = vunpack.c.h.b16 %v630
    %v669 = vunpack.c.l.b16 %v631
    %v670 = vunpack.c.h.b16 %v631
    %v671 = vunpack.c.l.b16 %v632
    %v672 = vunpack.c.h.b16 %v632
    %v673 = vunpack.c.l.b16 %v633
    %v674 = vunpack.c.h.b16 %v633
    %v675 = vunpack.c.l.b16 %v634
    %v676 = vunpack.c.h.b16 %v634
    %v677 = vunpack.c.l.b16 %v635
    %v678 = vunpack.c.h.b16 %v635
    %v679 = vunpack.c.l.b16 %v636
    %v680 = vunpack.c.h.b16 %v636
    %v681 = vunpack.c.l.b16 %v637
    %v682 = vunpack.c.h.b16 %v637
    %v683 = vunpack.c.l.b16 %v638
    %v684 = vunpack.c.h.b16 %v638
    %v685 = vunpack.c.l.b16 %v639
    %v686 = vunpack.c.h.b16 %v639
    %v687 = vunpack.c.l.b16 %v640
    %v688 = vunpack.c.h.b16 %v640
    %v689 = vpack.c.b16 %v659, %v657
    %v690 = vpack.c.b16 %v660, %v658
    %v691 = vpack.c.b16 %v663, %v661
    %v692 = vpack.c.b16 %v664, %v662
    %v693 = vpack.c.b16 %v667, %v665
    %v694 = vpack.c.b16 %v668, %v666
    %v695 = vpack.c.b16 %v671, %v669
    %v696 = vpack.c.b16 %v672, %v670
    %v697 = vpack.c.b16 %v675, %v673
    %v698 = vpack.c.b16 %v676, %v674
    %v699 = vpack.c.b16 %v679, %v677
    %v700 = vpack.c.b16 %v680, %v678
    %v701 = vpack.c.b16 %v683, %v681
    %v702 = vpack.c.b16 %v684, %v682
    %v703 = vpack.c.b16 %v687, %v685
    %v704 = vpack.c.b16 %v688, %v686
    %721 = vmatpush.bf16.msra.mxu0 %v703
    %722 = vmatpush.bf16.msra.mxu0 %v701
    %723 = vmatpush.bf16.msra.mxu0 %v699
    %724 = vmatpush.bf16.msra.mxu0 %v697
    %725 = vmatpush.bf16.msra.mxu0 %v695
    %726 = vmatpush.bf16.msra.mxu0 %v693
    %727 = vmatpush.bf16.msra.mxu0 %v691
    %728 = vmatpush.bf16.msra.mxu0 %v689
    %729 = vmatmul.bf16.gmra.mxu0 %v624
    %v730 = vpop.f32.mrf.mxu0
    %v731 = vadd.f32 0.0, %v730
    %v732 = vpop.f32.mrf.mxu0
    %733 = vdwg.mxu0
    %734 = vmatpush.bf16.msra.mxu0 %v704
    %735 = vmatpush.bf16.msra.mxu0 %v702
    %736 = vmatpush.bf16.msra.mxu0 %v700
    %737 = vmatpush.bf16.msra.mxu0 %v698
    %738 = vmatpush.bf16.msra.mxu0 %v696
    %739 = vmatpush.bf16.msra.mxu0 %v694
    %740 = vmatpush.bf16.msra.mxu0 %v692
    %741 = vmatpush.bf16.msra.mxu0 %v690
    %742 = vmatmul.bf16.gmra.mxu0 %v624
    %v743 = vpop.f32.mrf.mxu0
    %v744 = vadd.f32 0.0, %v743
    %v745 = vpop.f32.mrf.mxu0
    %746 = vdwg.mxu0
    %v747 = vld [vmem:[%s3 + $0x2] sm:$0x1]
    %v748 = vperm.slane %v747, 0
    %v749 = vadd.f32 %v731, %v748
    %v750 = vmax.f32 %v749, 0.0
    %v751 = vadd.f32 %v750, %v582
    %v752 = vld [vmem:[%s3 + $0x4] sm:$0x1]
    %v753 = vperm.slane %v752, 0
    %v754 = vadd.f32 %v751, %v753
    %v755 = vpack.c.bf16 %v754, %v754
    %s756 = scalar_lea.vmem [#allocation2], 128
    %v757 = vld [vmem:[%s756] sm:$0xf]
    %v758 = vld [vmem:[%s756 + $0x4] sm:$0xf]
    %v759 = vld [vmem:[%s756 + $0x8] sm:$0xf]
    %v760 = vld [vmem:[%s756 + $0xc] sm:$0xf]
    %v761 = vld [vmem:[%s756 + $0x10] sm:$0xf]
    %v762 = vld [vmem:[%s756 + $0x14] sm:$0xf]
    %v763 = vld [vmem:[%s756 + $0x18] sm:$0xf]
    %v764 = vld [vmem:[%s756 + $0x1c] sm:$0xf]
    %v765 = vld [vmem:[%s756 + $0x20] sm:$0xf]
    %v766 = vld [vmem:[%s756 + $0x24] sm:$0xf]
    %v767 = vld [vmem:[%s756 + $0x28] sm:$0xf]
    %v768 = vld [vmem:[%s756 + $0x2c] sm:$0xf]
    %v769 = vld [vmem:[%s756 + $0x30] sm:$0xf]
    %v770 = vld [vmem:[%s756 + $0x34] sm:$0xf]
    %v771 = vld [vmem:[%s756 + $0x38] sm:$0xf]
    %v772 = vld [vmem:[%s756 + $0x3c] sm:$0xf]
    %v773 = vld [vmem:[%s3 + $0x3] sm:$0x1]
    %v774 = vperm.slane %v773, 0
    %v791 = vunpack.c.l.b16 %v757
    %v792 = vunpack.c.l.b16 %v758
    %v793 = vunpack.c.l.b16 %v759
    %v794 = vunpack.c.l.b16 %v760
    %v795 = vunpack.c.l.b16 %v761
    %v796 = vunpack.c.l.b16 %v762
    %v797 = vunpack.c.l.b16 %v763
    %v798 = vunpack.c.l.b16 %v764
    %v799 = vunpack.c.l.b16 %v765
    %v800 = vunpack.c.l.b16 %v766
    %v801 = vunpack.c.l.b16 %v767
    %v802 = vunpack.c.l.b16 %v768
    %v803 = vunpack.c.l.b16 %v769
    %v804 = vunpack.c.l.b16 %v770
    %v805 = vunpack.c.l.b16 %v771
    %v806 = vunpack.c.l.b16 %v772
    %v807 = vpack.c.b16 %v792, %v791
    %v808 = vpack.c.b16 %v794, %v793
    %v809 = vpack.c.b16 %v796, %v795
    %v810 = vpack.c.b16 %v798, %v797
    %v811 = vpack.c.b16 %v800, %v799
    %v812 = vpack.c.b16 %v802, %v801
    %v813 = vpack.c.b16 %v804, %v803
    %v814 = vpack.c.b16 %v806, %v805
    %823 = vmatpush.bf16.msra.mxu0 %v814
    %824 = vmatpush.bf16.msra.mxu0 %v813
    %825 = vmatpush.bf16.msra.mxu0 %v812
    %826 = vmatpush.bf16.msra.mxu0 %v811
    %827 = vmatpush.bf16.msra.mxu0 %v810
    %828 = vmatpush.bf16.msra.mxu0 %v809
    %829 = vmatpush.bf16.msra.mxu0 %v808
    %830 = vmatpush.bf16.msra.mxu0 %v807
    %831 = vmatmul.bf16.gmra.mxu0 %v755
    %v832 = vpop.f32.mrf.mxu0
    %v833 = vadd.f32 %v774, %v832
    %v834 = vpop.f32.mrf.mxu0
    %835 = vdwg.mxu0
    %v836 = vmax.f32 %v833, 0.0
    %v837 = vadd.f32 %v836, %v744
    %v838 = vld [vmem:[%s3 + $0x5] sm:$0x1]
    %v839 = vperm.slane %v838, 0
    %v840 = vadd.f32 %v837, %v839
    %v841 = vpack.c.bf16 %v840, %v840
    %s842 = scalar_lea.vmem [#allocation2], 192
    %v843 = vld [vmem:[%s842] sm:$0xf]
    %v844 = vld [vmem:[%s842 + $0x4] sm:$0xf]
    %v845 = vld [vmem:[%s842 + $0x8] sm:$0xf]
    %v846 = vld [vmem:[%s842 + $0xc] sm:$0xf]
    %v847 = vld [vmem:[%s842 + $0x10] sm:$0xf]
    %v848 = vld [vmem:[%s842 + $0x14] sm:$0xf]
    %v849 = vld [vmem:[%s842 + $0x18] sm:$0xf]
    %v850 = vld [vmem:[%s842 + $0x1c] sm:$0xf]
    %v851 = vld [vmem:[%s842 + $0x20] sm:$0xf]
    %v852 = vld [vmem:[%s842 + $0x24] sm:$0xf]
    %v853 = vld [vmem:[%s842 + $0x28] sm:$0xf]
    %v854 = vld [vmem:[%s842 + $0x2c] sm:$0xf]
    %v855 = vld [vmem:[%s842 + $0x30] sm:$0xf]
    %v856 = vld [vmem:[%s842 + $0x34] sm:$0xf]
    %v857 = vld [vmem:[%s842 + $0x38] sm:$0xf]
    %v858 = vld [vmem:[%s842 + $0x3c] sm:$0xf]
    %v859 = vld [vmem:[%s3 + $0x6] sm:$0x1]
    %v860 = vperm.slane %v859, 0
    %v877 = vunpack.c.l.b16 %v843
    %v878 = vunpack.c.l.b16 %v844
    %v879 = vunpack.c.l.b16 %v845
    %v880 = vunpack.c.l.b16 %v846
    %v881 = vunpack.c.l.b16 %v847
    %v882 = vunpack.c.l.b16 %v848
    %v883 = vunpack.c.l.b16 %v849
    %v884 = vunpack.c.l.b16 %v850
    %v885 = vunpack.c.l.b16 %v851
    %v886 = vunpack.c.l.b16 %v852
    %v887 = vunpack.c.l.b16 %v853
    %v888 = vunpack.c.l.b16 %v854
    %v889 = vunpack.c.l.b16 %v855
    %v890 = vunpack.c.l.b16 %v856
    %v891 = vunpack.c.l.b16 %v857
    %v892 = vunpack.c.l.b16 %v858
    %v893 = vpack.c.b16 %v878, %v877
    %v894 = vpack.c.b16 %v880, %v879
    %v895 = vpack.c.b16 %v882, %v881
    %v896 = vpack.c.b16 %v884, %v883
    %v897 = vpack.c.b16 %v886, %v885
    %v898 = vpack.c.b16 %v888, %v887
    %v899 = vpack.c.b16 %v890, %v889
    %v900 = vpack.c.b16 %v892, %v891
    %909 = vmatpush.bf16.msra.mxu0 %v900
    %910 = vmatpush.bf16.msra.mxu0 %v899
    %911 = vmatpush.bf16.msra.mxu0 %v898
    %912 = vmatpush.bf16.msra.mxu0 %v897
    %913 = vmatpush.bf16.msra.mxu0 %v896
    %914 = vmatpush.bf16.msra.mxu0 %v895
    %915 = vmatpush.bf16.msra.mxu0 %v894
    %916 = vmatpush.bf16.msra.mxu0 %v893
    %917 = vmatmul.bf16.gmra.mxu0 %v841
    %v918 = vpop.f32.mrf.mxu0
    %v919 = vadd.f32 %v860, %v918
    %v920 = vpop.f32.mrf.mxu0
    %921 = vdwg.mxu0
    %v922 = vmax.f32 %v919, 0.0
    %v923 = vadd.f32 %v922, %v595
    %v924 = vld [vmem:[%s3 + $0x8] sm:$0x1]
    %v925 = vperm.slane %v924, 0
    %v926 = vadd.f32 %v923, %v925
    %v927 = vpack.c.bf16 %v926, %v926
    %s928 = scalar_lea.vmem [#allocation2], 256
    %v929 = vld [vmem:[%s928] sm:$0xf]
    %v930 = vld [vmem:[%s928 + $0x4] sm:$0xf]
    %v931 = vld [vmem:[%s928 + $0x8] sm:$0xf]
    %v932 = vld [vmem:[%s928 + $0xc] sm:$0xf]
    %v933 = vld [vmem:[%s928 + $0x10] sm:$0xf]
    %v934 = vld [vmem:[%s928 + $0x14] sm:$0xf]
    %v935 = vld [vmem:[%s928 + $0x18] sm:$0xf]
    %v936 = vld [vmem:[%s928 + $0x1c] sm:$0xf]
    %v937 = vld [vmem:[%s928 + $0x20] sm:$0xf]
    %v938 = vld [vmem:[%s928 + $0x24] sm:$0xf]
    %v939 = vld [vmem:[%s928 + $0x28] sm:$0xf]
    %v940 = vld [vmem:[%s928 + $0x2c] sm:$0xf]
    %v941 = vld [vmem:[%s928 + $0x30] sm:$0xf]
    %v942 = vld [vmem:[%s928 + $0x34] sm:$0xf]
    %v943 = vld [vmem:[%s928 + $0x38] sm:$0xf]
    %v944 = vld [vmem:[%s928 + $0x3c] sm:$0xf]
    %v945 = vld [vmem:[%s3 + $0x7] sm:$0x1]
    %v946 = vperm.slane %v945, 0
    %v963 = vunpack.c.l.b16 %v929
    %v964 = vunpack.c.l.b16 %v930
    %v965 = vunpack.c.l.b16 %v931
    %v966 = vunpack.c.l.b16 %v932
    %v967 = vunpack.c.l.b16 %v933
    %v968 = vunpack.c.l.b16 %v934
    %v969 = vunpack.c.l.b16 %v935
    %v970 = vunpack.c.l.b16 %v936
    %v971 = vunpack.c.l.b16 %v937
    %v972 = vunpack.c.l.b16 %v938
    %v973 = vunpack.c.l.b16 %v939
    %v974 = vunpack.c.l.b16 %v940
    %v975 = vunpack.c.l.b16 %v941
    %v976 = vunpack.c.l.b16 %v942
    %v977 = vunpack.c.l.b16 %v943
    %v978 = vunpack.c.l.b16 %v944
    %v979 = vpack.c.b16 %v964, %v963
    %v980 = vpack.c.b16 %v966, %v965
    %v981 = vpack.c.b16 %v968, %v967
    %v982 = vpack.c.b16 %v970, %v969
    %v983 = vpack.c.b16 %v972, %v971
    %v984 = vpack.c.b16 %v974, %v973
    %v985 = vpack.c.b16 %v976, %v975
    %v986 = vpack.c.b16 %v978, %v977
    %995 = vmatpush.bf16.msra.mxu0 %v986
    %996 = vmatpush.bf16.msra.mxu0 %v985
    %997 = vmatpush.bf16.msra.mxu0 %v984
    %998 = vmatpush.bf16.msra.mxu0 %v983
    %999 = vmatpush.bf16.msra.mxu0 %v982
    %1000 = vmatpush.bf16.msra.mxu0 %v981
    %1001 = vmatpush.bf16.msra.mxu0 %v980
    %1002 = vmatpush.bf16.msra.mxu0 %v979
    %1003 = vmatmul.bf16.gmra.mxu0 %v927
    %v1004 = vpop.f32.mrf.mxu0
    %v1005 = vadd.f32 %v946, %v1004
    %v1006 = vpop.f32.mrf.mxu0
    %1007 = vdwg.mxu0
    %v1008 = vmax.f32 %v1005, 0.0
    %v1009 = vadd.f32 %v1008, %v840
    %v1010 = vpack.c.bf16 %v1009, %v1009
    %s1011 = scalar_lea.vmem [#allocation2], 320
    %v1012 = vld [vmem:[%s1011] sm:$0xf]
    %v1013 = vld [vmem:[%s1011 + $0x4] sm:$0xf]
    %v1014 = vld [vmem:[%s1011 + $0x8] sm:$0xf]
    %v1015 = vld [vmem:[%s1011 + $0xc] sm:$0xf]
    %v1016 = vld [vmem:[%s1011 + $0x10] sm:$0xf]
    %v1017 = vld [vmem:[%s1011 + $0x14] sm:$0xf]
    %v1018 = vld [vmem:[%s1011 + $0x18] sm:$0xf]
    %v1019 = vld [vmem:[%s1011 + $0x1c] sm:$0xf]
    %v1020 = vld [vmem:[%s1011 + $0x20] sm:$0xf]
    %v1021 = vld [vmem:[%s1011 + $0x24] sm:$0xf]
    %v1022 = vld [vmem:[%s1011 + $0x28] sm:$0xf]
    %v1023 = vld [vmem:[%s1011 + $0x2c] sm:$0xf]
    %v1024 = vld [vmem:[%s1011 + $0x30] sm:$0xf]
    %v1025 = vld [vmem:[%s1011 + $0x34] sm:$0xf]
    %v1026 = vld [vmem:[%s1011 + $0x38] sm:$0xf]
    %v1027 = vld [vmem:[%s1011 + $0x3c] sm:$0xf]
    %v1028 = vld [vmem:[%s3 + $0x9] sm:$0x1]
    %v1029 = vperm.slane %v1028, 0
    %v1046 = vunpack.c.l.b16 %v1012
    %v1047 = vunpack.c.l.b16 %v1013
    %v1048 = vunpack.c.l.b16 %v1014
    %v1049 = vunpack.c.l.b16 %v1015
    %v1050 = vunpack.c.l.b16 %v1016
    %v1051 = vunpack.c.l.b16 %v1017
    %v1052 = vunpack.c.l.b16 %v1018
    %v1053 = vunpack.c.l.b16 %v1019
    %v1054 = vunpack.c.l.b16 %v1020
    %v1055 = vunpack.c.l.b16 %v1021
    %v1056 = vunpack.c.l.b16 %v1022
    %v1057 = vunpack.c.l.b16 %v1023
    %v1058 = vunpack.c.l.b16 %v1024
    %v1059 = vunpack.c.l.b16 %v1025
    %v1060 = vunpack.c.l.b16 %v1026
    %v1061 = vunpack.c.l.b16 %v1027
    %v1062 = vpack.c.b16 %v1047, %v1046
    %v1063 = vpack.c.b16 %v1049, %v1048
    %v1064 = vpack.c.b16 %v1051, %v1050
    %v1065 = vpack.c.b16 %v1053, %v1052
    %v1066 = vpack.c.b16 %v1055, %v1054
    %v1067 = vpack.c.b16 %v1057, %v1056
    %v1068 = vpack.c.b16 %v1059, %v1058
    %v1069 = vpack.c.b16 %v1061, %v1060
    %1078 = vmatpush.bf16.msra.mxu0 %v1069
    %1079 = vmatpush.bf16.msra.mxu0 %v1068
    %1080 = vmatpush.bf16.msra.mxu0 %v1067
    %1081 = vmatpush.bf16.msra.mxu0 %v1066
    %1082 = vmatpush.bf16.msra.mxu0 %v1065
    %1083 = vmatpush.bf16.msra.mxu0 %v1064
    %1084 = vmatpush.bf16.msra.mxu0 %v1063
    %1085 = vmatpush.bf16.msra.mxu0 %v1062
    %1086 = vmatmul.bf16.gmra.mxu0 %v1010
    %v1087 = vpop.f32.mrf.mxu0
    %v1088 = vadd.f32 %v1029, %v1087
    %v1089 = vpop.f32.mrf.mxu0
    %1090 = vdwg.mxu0
    %v1091 = vmax.f32 %v1088, 0.0
    %v1092 = vadd.f32 %v1091, %v608
    %v1093 = vld [vmem:[%s3 + $0xb] sm:$0x1]
    %v1094 = vperm.slane %v1093, 0
    %v1095 = vadd.f32 %v1092, %v1094
    %v1096 = vpack.c.bf16 %v1095, %v1095
    %s1097 = scalar_lea.vmem [#allocation2], 384
    %v1098 = vld [vmem:[%s1097] sm:$0xf]
    %v1099 = vld [vmem:[%s1097 + $0x4] sm:$0xf]
    %v1100 = vld [vmem:[%s1097 + $0x8] sm:$0xf]
    %v1101 = vld [vmem:[%s1097 + $0xc] sm:$0xf]
    %v1102 = vld [vmem:[%s1097 + $0x10] sm:$0xf]
    %v1103 = vld [vmem:[%s1097 + $0x14] sm:$0xf]
    %v1104 = vld [vmem:[%s1097 + $0x18] sm:$0xf]
    %v1105 = vld [vmem:[%s1097 + $0x1c] sm:$0xf]
    %v1106 = vld [vmem:[%s1097 + $0x20] sm:$0xf]
    %v1107 = vld [vmem:[%s1097 + $0x24] sm:$0xf]
    %v1108 = vld [vmem:[%s1097 + $0x28] sm:$0xf]
    %v1109 = vld [vmem:[%s1097 + $0x2c] sm:$0xf]
    %v1110 = vld [vmem:[%s1097 + $0x30] sm:$0xf]
    %v1111 = vld [vmem:[%s1097 + $0x34] sm:$0xf]
    %v1112 = vld [vmem:[%s1097 + $0x38] sm:$0xf]
    %v1113 = vld [vmem:[%s1097 + $0x3c] sm:$0xf]
    %v1114 = vld [vmem:[%s3 + $0xa] sm:$0x1]
    %v1115 = vperm.slane %v1114, 0
    %v1132 = vunpack.c.l.b16 %v1098
    %v1133 = vunpack.c.l.b16 %v1099
    %v1134 = vunpack.c.l.b16 %v1100
    %v1135 = vunpack.c.l.b16 %v1101
    %v1136 = vunpack.c.l.b16 %v1102
    %v1137 = vunpack.c.l.b16 %v1103
    %v1138 = vunpack.c.l.b16 %v1104
    %v1139 = vunpack.c.l.b16 %v1105
    %v1140 = vunpack.c.l.b16 %v1106
    %v1141 = vunpack.c.l.b16 %v1107
    %v1142 = vunpack.c.l.b16 %v1108
    %v1143 = vunpack.c.l.b16 %v1109
    %v1144 = vunpack.c.l.b16 %v1110
    %v1145 = vunpack.c.l.b16 %v1111
    %v1146 = vunpack.c.l.b16 %v1112
    %v1147 = vunpack.c.l.b16 %v1113
    %v1148 = vpack.c.b16 %v1133, %v1132
    %v1149 = vpack.c.b16 %v1135, %v1134
    %v1150 = vpack.c.b16 %v1137, %v1136
    %v1151 = vpack.c.b16 %v1139, %v1138
    %v1152 = vpack.c.b16 %v1141, %v1140
    %v1153 = vpack.c.b16 %v1143, %v1142
    %v1154 = vpack.c.b16 %v1145, %v1144
    %v1155 = vpack.c.b16 %v1147, %v1146
    %1164 = vmatpush.bf16.msra.mxu0 %v1155
    %1165 = vmatpush.bf16.msra.mxu0 %v1154
    %1166 = vmatpush.bf16.msra.mxu0 %v1153
    %1167 = vmatpush.bf16.msra.mxu0 %v1152
    %1168 = vmatpush.bf16.msra.mxu0 %v1151
    %1169 = vmatpush.bf16.msra.mxu0 %v1150
    %1170 = vmatpush.bf16.msra.mxu0 %v1149
    %1171 = vmatpush.bf16.msra.mxu0 %v1148
    %1172 = vmatmul.bf16.gmra.mxu0 %v1096
    %v1173 = vpop.f32.mrf.mxu0
    %v1174 = vadd.f32 %v1115, %v1173
    %v1175 = vpop.f32.mrf.mxu0
    %1176 = vdwg.mxu0
    %v1177 = vmax.f32 %v1174, 0.0
    %v1178 = vadd.f32 %v1177, %v1009
    %v1179 = vpack.c.bf16 %v1178, %v1178
    %v1180 = vld [vmem:[#allocation5 + $0x8] sm:$0xff]
    %v1181 = vld [vmem:[#allocation5 + $0x28] sm:$0xff]
    %v1182 = vld [vmem:[#allocation5 + $0x48] sm:$0xff]
    %v1183 = vld [vmem:[#allocation5 + $0x68] sm:$0xff]
    %v1184 = vld [vmem:[#allocation5 + $0x88] sm:$0xff]
    %v1185 = vld [vmem:[#allocation5 + $0xa8] sm:$0xff]
    %v1186 = vld [vmem:[#allocation5 + $0xc8] sm:$0xff]
    %v1187 = vld [vmem:[#allocation5 + $0xe8] sm:$0xff]
    %v1188 = vld [vmem:[#allocation5 + $0x108] sm:$0xff]
    %v1189 = vld [vmem:[#allocation5 + $0x128] sm:$0xff]
    %v1190 = vld [vmem:[#allocation5 + $0x148] sm:$0xff]
    %v1191 = vld [vmem:[#allocation5 + $0x168] sm:$0xff]
    %v1192 = vld [vmem:[#allocation5 + $0x188] sm:$0xff]
    %v1193 = vld [vmem:[#allocation5 + $0x1a8] sm:$0xff]
    %v1194 = vld [vmem:[#allocation5 + $0x1c8] sm:$0xff]
    %v1195 = vld [vmem:[#allocation5 + $0x1e8] sm:$0xff]
    %v1212 = vunpack.c.l.b16 %v1180
    %v1213 = vunpack.c.h.b16 %v1180
    %v1214 = vunpack.c.l.b16 %v1181
    %v1215 = vunpack.c.h.b16 %v1181
    %v1216 = vunpack.c.l.b16 %v1182
    %v1217 = vunpack.c.h.b16 %v1182
    %v1218 = vunpack.c.l.b16 %v1183
    %v1219 = vunpack.c.h.b16 %v1183
    %v1220 = vunpack.c.l.b16 %v1184
    %v1221 = vunpack.c.h.b16 %v1184
    %v1222 = vunpack.c.l.b16 %v1185
    %v1223 = vunpack.c.h.b16 %v1185
    %v1224 = vunpack.c.l.b16 %v1186
    %v1225 = vunpack.c.h.b16 %v1186
    %v1226 = vunpack.c.l.b16 %v1187
    %v1227 = vunpack.c.h.b16 %v1187
    %v1228 = vunpack.c.l.b16 %v1188
    %v1229 = vunpack.c.h.b16 %v1188
    %v1230 = vunpack.c.l.b16 %v1189
    %v1231 = vunpack.c.h.b16 %v1189
    %v1232 = vunpack.c.l.b16 %v1190
    %v1233 = vunpack.c.h.b16 %v1190
    %v1234 = vunpack.c.l.b16 %v1191
    %v1235 = vunpack.c.h.b16 %v1191
    %v1236 = vunpack.c.l.b16 %v1192
    %v1237 = vunpack.c.h.b16 %v1192
    %v1238 = vunpack.c.l.b16 %v1193
    %v1239 = vunpack.c.h.b16 %v1193
    %v1240 = vunpack.c.l.b16 %v1194
    %v1241 = vunpack.c.h.b16 %v1194
    %v1242 = vunpack.c.l.b16 %v1195
    %v1243 = vunpack.c.h.b16 %v1195
    %v1244 = vpack.c.b16 %v1214, %v1212
    %v1245 = vpack.c.b16 %v1215, %v1213
    %v1246 = vpack.c.b16 %v1218, %v1216
    %v1247 = vpack.c.b16 %v1219, %v1217
    %v1248 = vpack.c.b16 %v1222, %v1220
    %v1249 = vpack.c.b16 %v1223, %v1221
    %v1250 = vpack.c.b16 %v1226, %v1224
    %v1251 = vpack.c.b16 %v1227, %v1225
    %v1252 = vpack.c.b16 %v1230, %v1228
    %v1253 = vpack.c.b16 %v1231, %v1229
    %v1254 = vpack.c.b16 %v1234, %v1232
    %v1255 = vpack.c.b16 %v1235, %v1233
    %v1256 = vpack.c.b16 %v1238, %v1236
    %v1257 = vpack.c.b16 %v1239, %v1237
    %v1258 = vpack.c.b16 %v1242, %v1240
    %v1259 = vpack.c.b16 %v1243, %v1241
    %1276 = vmatpush.bf16.msra.mxu0 %v1258
    %1277 = vmatpush.bf16.msra.mxu0 %v1256
    %1278 = vmatpush.bf16.msra.mxu0 %v1254
    %1279 = vmatpush.bf16.msra.mxu0 %v1252
    %1280 = vmatpush.bf16.msra.mxu0 %v1250
    %1281 = vmatpush.bf16.msra.mxu0 %v1248
    %1282 = vmatpush.bf16.msra.mxu0 %v1246
    %1283 = vmatpush.bf16.msra.mxu0 %v1244
    %1284 = vmatmul.bf16.gmra.mxu0 %v1179
    %v1285 = vpop.f32.mrf.mxu0
    %v1286 = vadd.f32 0.0, %v1285
    %v1287 = vpop.f32.mrf.mxu0
    %1288 = vdwg.mxu0
    %1289 = vmatpush.bf16.msra.mxu0 %v1259
    %1290 = vmatpush.bf16.msra.mxu0 %v1257
    %1291 = vmatpush.bf16.msra.mxu0 %v1255
    %1292 = vmatpush.bf16.msra.mxu0 %v1253
    %1293 = vmatpush.bf16.msra.mxu0 %v1251
    %1294 = vmatpush.bf16.msra.mxu0 %v1249
    %1295 = vmatpush.bf16.msra.mxu0 %v1247
    %1296 = vmatpush.bf16.msra.mxu0 %v1245
    %1297 = vmatmul.bf16.gmra.mxu0 %v1179
    %v1298 = vpop.f32.mrf.mxu0
    %v1299 = vadd.f32 0.0, %v1298
    %v1300 = vpop.f32.mrf.mxu0
    %1301 = vdwg.mxu0
    %v1302 = vld [vmem:[%s3 + $0xc] sm:$0x1]
    %v1303 = vperm.slane %v1302, 0
    %v1304 = vadd.f32 %v1286, %v1303
    %v1305 = vmax.f32 %v1304, 0.0
    %v1306 = vadd.f32 %v1305, %v621
    %v1307 = vld [vmem:[%s3 + $0xe] sm:$0x1]
    %v1308 = vperm.slane %v1307, 0
    %v1309 = vadd.f32 %v1306, %v1308
    %v1310 = vpack.c.bf16 %v1309, %v1309
    %s1311 = scalar_lea.vmem [#allocation2], 448
    %v1312 = vld [vmem:[%s1311] sm:$0xf]
    %v1313 = vld [vmem:[%s1311 + $0x4] sm:$0xf]
    %v1314 = vld [vmem:[%s1311 + $0x8] sm:$0xf]
    %v1315 = vld [vmem:[%s1311 + $0xc] sm:$0xf]
    %v1316 = vld [vmem:[%s1311 + $0x10] sm:$0xf]
    %v1317 = vld [vmem:[%s1311 + $0x14] sm:$0xf]
    %v1318 = vld [vmem:[%s1311 + $0x18] sm:$0xf]
    %v1319 = vld [vmem:[%s1311 + $0x1c] sm:$0xf]
    %v1320 = vld [vmem:[%s1311 + $0x20] sm:$0xf]
    %v1321 = vld [vmem:[%s1311 + $0x24] sm:$0xf]
    %v1322 = vld [vmem:[%s1311 + $0x28] sm:$0xf]
    %v1323 = vld [vmem:[%s1311 + $0x2c] sm:$0xf]
    %v1324 = vld [vmem:[%s1311 + $0x30] sm:$0xf]
    %v1325 = vld [vmem:[%s1311 + $0x34] sm:$0xf]
    %v1326 = vld [vmem:[%s1311 + $0x38] sm:$0xf]
    %v1327 = vld [vmem:[%s1311 + $0x3c] sm:$0xf]
    %v1328 = vld [vmem:[%s3 + $0xd] sm:$0x1]
    %v1329 = vperm.slane %v1328, 0
    %v1346 = vunpack.c.l.b16 %v1312
    %v1347 = vunpack.c.l.b16 %v1313
    %v1348 = vunpack.c.l.b16 %v1314
    %v1349 = vunpack.c.l.b16 %v1315
    %v1350 = vunpack.c.l.b16 %v1316
    %v1351 = vunpack.c.l.b16 %v1317
    %v1352 = vunpack.c.l.b16 %v1318
    %v1353 = vunpack.c.l.b16 %v1319
    %v1354 = vunpack.c.l.b16 %v1320
    %v1355 = vunpack.c.l.b16 %v1321
    %v1356 = vunpack.c.l.b16 %v1322
    %v1357 = vunpack.c.l.b16 %v1323
    %v1358 = vunpack.c.l.b16 %v1324
    %v1359 = vunpack.c.l.b16 %v1325
    %v1360 = vunpack.c.l.b16 %v1326
    %v1361 = vunpack.c.l.b16 %v1327
    %v1362 = vpack.c.b16 %v1347, %v1346
    %v1363 = vpack.c.b16 %v1349, %v1348
    %v1364 = vpack.c.b16 %v1351, %v1350
    %v1365 = vpack.c.b16 %v1353, %v1352
    %v1366 = vpack.c.b16 %v1355, %v1354
    %v1367 = vpack.c.b16 %v1357, %v1356
    %v1368 = vpack.c.b16 %v1359, %v1358
    %v1369 = vpack.c.b16 %v1361, %v1360
    %1378 = vmatpush.bf16.msra.mxu0 %v1369
    %1379 = vmatpush.bf16.msra.mxu0 %v1368
    %1380 = vmatpush.bf16.msra.mxu0 %v1367
    %1381 = vmatpush.bf16.msra.mxu0 %v1366
    %1382 = vmatpush.bf16.msra.mxu0 %v1365
    %1383 = vmatpush.bf16.msra.mxu0 %v1364
    %1384 = vmatpush.bf16.msra.mxu0 %v1363
    %1385 = vmatpush.bf16.msra.mxu0 %v1362
    %1386 = vmatmul.bf16.gmra.mxu0 %v1310
    %v1387 = vpop.f32.mrf.mxu0
    %v1388 = vadd.f32 %v1329, %v1387
    %v1389 = vpop.f32.mrf.mxu0
    %1390 = vdwg.mxu0
    %v1391 = vmax.f32 %v1388, 0.0
    %v1392 = vadd.f32 %v1391, %v1299
    %v1393 = vld [vmem:[%s3 + $0xf] sm:$0x1]
    %v1394 = vperm.slane %v1393, 0
    %v1395 = vadd.f32 %v1392, %v1394
    %vm1396 = vcmask 123904
    %1397 = vst.msk [vmem:[#allocation7] sm:$0x3] %vm1396, %v1395
    // Predicated region
    $region26: #{latent_unet_forward.1} parent=1 // pred_check
      _
    $region27: #{latent_unet_forward.1} parent=1 // pred_check_branch
      %1399 = sbr.rel (0) target = $region29
    $region28: #{latent_unet_forward.1} parent=1 // pred_region
      %1401 = vsyncadd [#allocation4], 0
      %s1403 = sshll.u32 [#allocation7], 4
      %s1404 = int_to_ptr.vmem [resolvable:$true] %s1403
      %s1405 = sshll.u32 %s4, 4
      %s1406 = int_to_ptr.hbm [resolvable:$true] %s1405
      %1408 = dma.vmem_to_hbm [thread:$0]  %s1404, 32, %s1406, [#allocation4]
    $region29: #{latent_unet_forward.1} parent=1 // pred_fallthru
      _
    // Predicated region
    $region30: #{latent_unet_forward.1} parent=1 // pred_check
      _
    $region31: #{latent_unet_forward.1} parent=1 // pred_check_branch
      %1410 = sbr.rel (0) target = $region33
    $region32: #{latent_unet_forward.1} parent=1 // pred_region
      %1412 = dma.done [#allocation4], 32
    $region33: #{latent_unet_forward.1} parent=1 // pred_fallthru
      _
    %1413 = vsyncpa [#allocation3], 1
    %1414 = vsyncpa [#allocation6], 1
    %1415 = vsyncpa [#allocation4], 1

</llo_original>
